<compile_context>
chip_gen: v6e
topology: v6e:2x2x1
jax: 0.10.0
libtpu: 0.0.40
codegen_flags: <defaults>
</compile_context>

<pallas_src>
import functools

import numpy as np
import jax
import jax.numpy as jnp
from jax import lax
from jax.experimental import pallas as pl
from jax.experimental.pallas import tpu as pltpu

# Geometry implied by the PyTorch module (18x18 image -> 2*2*32 flatten).
IMG = 18
X2_FLAT = IMG * IMG          # 324
X2_PAD = 384                 # lane-pad flattened image (multiple of 128)
X1_PAD = 128                 # obs lane-padded so layer-1 concat is 128-aligned
CAT_PAD = 256                # [x1_pad | conv_feat] lane concat
H_PAD = 512                  # reg hidden 500 -> 512 (zero-padded, exact)
H_RAW = 500
OUT_PAD = 128                # lane-dense head output (6 / 1 padded to 128)
CONV_FLAT = 2 * 2 * 32       # 128
B_SUB = 16                   # sublane pad so bf16 output tile is full/unmasked


# ----------------------------------------------------------------------------
# Fused Pallas kernel: one grid step == one tower (actor or critic)
# ----------------------------------------------------------------------------
def _actor_critic_kernel(x1_ref, x2_ref,
                         wc1_ref, bc1_ref, wc2_ref, bc2_ref, wc3_ref, bc3_ref,
                         w1_ref, b1_ref, w2_ref, b2_ref, w3_ref, b3_ref,
                         o_ref, *, action_dim):
    t = pl.program_id(0)

    def mm(a, w_ref, b_ref):  # bf16 MXU matmul, f32 accumulation, + f32 bias
        return jnp.dot(a.astype(jnp.bfloat16), w_ref[0],
                       preferred_element_type=jnp.float32) + b_ref[0]

    # feature{1,2}: conv tower folded into 3 dense (Toeplitz) matmuls + ReLU.
    h = jnp.maximum(mm(x2_ref[...], wc1_ref, bc1_ref), 0.0)     # [B, 256]
    h = jnp.maximum(mm(h, wc2_ref, bc2_ref), 0.0)               # [B, 128]
    fc = jnp.maximum(mm(h, wc3_ref, bc3_ref), 0.0)              # [B, 128]

    # reg layer 1 with feature{1,2}v pre-folded into w1 (host-side Wv@W1v):
    # single 128-aligned lane concat -> one K=256 MXU push.
    cat = jnp.concatenate([x1_ref[...], fc.astype(jnp.bfloat16)], axis=-1)
    hh = jnp.maximum(mm(cat, w1_ref, b1_ref), 0.0)              # [B, 512]
    hh = jnp.maximum(mm(hh, w2_ref, b2_ref), 0.0)               # [B, 256]
    y = mm(hh, w3_ref, b3_ref)                                  # [B, 128] f32

    @pl.when(t == 0)
    def _actor():  # masked softmax over the first `action_dim` lanes
        col = lax.broadcasted_iota(jnp.int32, y.shape, 1)
        valid = col < action_dim
        logits = jnp.where(valid, y, -1e30)
        m = jnp.max(logits, axis=-1, keepdims=True)
        e = jnp.where(valid, jnp.exp(logits - m), 0.0)
        s = jnp.sum(e, axis=-1, keepdims=True)
        probs = e / s                    # exact division (PPO log-prob numerics)
        o_ref[...] = probs[None].astype(o_ref.dtype)

    @pl.when(t == 1)
    def _critic():  # raw linear output; state value lives in lane 0
        o_ref[...] = y[None].astype(o_ref.dtype)


def _spec_for(a):
    if a.ndim == 3:   # per-tower stacked weight/bias: tower axis selects block
        return pl.BlockSpec((1,) + a.shape[1:], lambda t: (t, 0, 0))
    return pl.BlockSpec(a.shape, lambda t: (0, 0))    # shared input, whole array


@functools.partial(jax.jit, static_argnums=(3,))
def actor_critic_forward(x1, x2_nchw, prep, action_dim):
    """Returns (action_probs [B, action_dim], state_value [B])."""
    b = x1.shape[0]
    b_pad = max(B_SUB, -(-b // B_SUB) * B_SUB)       # full-sublane bf16 tiles

    # NCHW -> NHWC flatten (matches folded conv weight layout); lane & batch pad.
    x2 = jnp.transpose(x2_nchw, (0, 2, 3, 1)).reshape(b, -1)
    x2 = jnp.pad(x2, ((0, b_pad - b), (0, X2_PAD - x2.shape[1])))
    x1p = jnp.pad(x1, ((0, b_pad - b), (0, X1_PAD - x1.shape[1])))
    x1b = x1p.astype(jnp.bfloat16)
    x2b = x2.astype(jnp.bfloat16)

    args = (x1b, x2b,
            prep["wc1"], prep["bc1"], prep["wc2"], prep["bc2"],
            prep["wc3"], prep["bc3"],
            prep["w1"], prep["b1"], prep["w2"], prep["b2"],
            prep["w3"], prep["b3"])

    # Honest cost hint so XLA overlaps neighbouring ops with the custom call.
    macs = (X2_PAD * 256 + 256 * 128 + 128 * 128
            + CAT_PAD * H_PAD + H_PAD * 256 + 256 * OUT_PAD)
    cost = pl.CostEstimate(
        flops=2 * 2 * macs * b_pad,                      # 2 towers
        transcendentals=b_pad * OUT_PAD,                 # softmax exp
        bytes_accessed=2 * 2 * macs                      # bf16 weights
                       + b_pad * (X1_PAD + X2_PAD) * 2   # inputs
                       + 2 * b_pad * OUT_PAD * 2)        # outputs

    out = pl.pallas_call(
        functools.partial(_actor_critic_kernel, action_dim=action_dim),
        out_shape=jax.ShapeDtypeStruct((2, b_pad, OUT_PAD), jnp.bfloat16),
        grid=(2,),                                   # tower axis: 0=actor, 1=critic
        in_specs=[_spec_for(a) for a in args],
        out_specs=pl.BlockSpec((1, b_pad, OUT_PAD), lambda t: (t, 0, 0)),
        compiler_params=pltpu.CompilerParams(
            dimension_semantics=("parallel",)),      # v7x: one tower per TensorCore
        cost_estimate=cost,
    )(*args)

    probs = out[0, :b, :action_dim].astype(jnp.float32)
    value = out[1, :b, 0].astype(jnp.float32)        # torch.squeeze(state_value)
    return probs, value


def action_layer(x1, x2_nchw, prep, action_dim):
    return actor_critic_forward(x1, x2_nchw, prep, action_dim)[0]


def value_layer(x1, x2_nchw, prep, action_dim):
    return actor_critic_forward(x1, x2_nchw, prep, action_dim)[1]


# TODO(synk): Categorical sampling / log_prob / entropy and Memory bookkeeping
# from act()/evaluate() are RL-loop glue (torch.distributions), not network
# forward compute; intentionally not implemented as Pallas kernels.


# ----------------------------------------------------------------------------
# One-time parameter preparation (host-side): fold conv -> dense, fold
# featureNv into reg layer-1, pad, stack towers.
# ----------------------------------------------------------------------------
def _fold_conv(w, b, h_in, w_in, c_in, kh, kw, stride, pad):
    """Fold a Conv2d (patch-matmul weights [kh*kw*Cin, Cout], HWC order) into a
    dense matmul over the flattened (HWC) input map; zero padding folded in."""
    oh = (h_in + 2 * pad - kh) // stride + 1
    ow = (w_in + 2 * pad - kw) // stride + 1
    w_np = np.asarray(w, np.float32)
    b_np = np.asarray(b, np.float32)
    sel = np.zeros((h_in * w_in * c_in, oh * ow, kh * kw * c_in), np.float32)
    for o_h in range(oh):
        for o_w in range(ow):
            for i in range(kh):
                hh = o_h * stride + i - pad
                if not 0 <= hh < h_in:
                    continue
                for j in range(kw):
                    ww = o_w * stride + j - pad
                    if not 0 <= ww < w_in:
                        continue
                    for ci in range(c_in):
                        sel[(hh * w_in + ww) * c_in + ci,
                            o_h * ow + o_w,
                            (i * kw + j) * c_in + ci] = 1.0
    w_dense = np.einsum("iok,kc->ioc", sel, w_np).reshape(
        h_in * w_in * c_in, oh * ow * w_np.shape[1])
    b_dense = np.tile(b_np, oh * ow)
    return w_dense, b_dense


def _prep_tower(feat, fv_w, fv_b, reg, obs_dim):
    wc1, bc1 = _fold_conv(feat["c1_w"], feat["c1_b"], IMG, IMG, 1, 8, 8, 4, 1)
    wc2, bc2 = _fold_conv(feat["c2_w"], feat["c2_b"], 4, 4, 16, 4, 4, 2, 1)
    wc3, bc3 = _fold_conv(feat["c3_w"], feat["c3_b"], 2, 2, 32, 3, 3, 1, 1)
    wc1 = np.pad(wc1, ((0, X2_PAD - wc1.shape[0]), (0, 0)))      # K: 324 -> 384

    # --- fold featureNv (Linear, no activation) into reg layer-1 -------------
    w1 = np.asarray(reg["w1"], np.float32)            # [obs + 128, 500]
    b1 = np.asarray(reg["b1"], np.float32)            # [500]
    wv = np.asarray(fv_w, np.float32)                 # [obs, obs]
    bv = np.asarray(fv_b, np.float32)                 # [obs]
    w1v, w1c = w1[:obs_dim], w1[obs_dim:]             # [obs,500], [128,500]
    w1x = wv @ w1v                                    # (x1 @ Wv) @ W1v fold
    b1f = bv @ w1v + b1

    # single 128-aligned lane-concat layer-1 weight: rows 0..obs-1 take x1,
    # rows 128..255 take conv features; everything else is exact zero padding.
    w1cat = np.zeros((CAT_PAD, H_PAD), np.float32)
    w1cat[:obs_dim, :H_RAW] = w1x
    w1cat[X1_PAD:X1_PAD + CONV_FLAT, :H_RAW] = w1c
    b1f = np.pad(b1f, (0, H_PAD - H_RAW))             # 500 -> 512

    w2 = np.pad(np.asarray(reg["w2"], np.float32), ((0, H_PAD - H_RAW), (0, 0)))
    b2 = np.asarray(reg["b2"], np.float32)
    w3 = np.pad(np.asarray(reg["w3"], np.float32),
                ((0, 0), (0, OUT_PAD - reg["w3"].shape[1])))     # 6/1 -> 128
    b3 = np.pad(np.asarray(reg["b3"], np.float32), (0, OUT_PAD - reg["b3"].shape[0]))

    return dict(wc1=wc1, bc1=bc1, wc2=wc2, bc2=bc2, wc3=wc3, bc3=bc3,
                w1=w1cat, b1=b1f, w2=w2, b2=b2, w3=w3, b3=b3)


def prepare_params(params, obs_dim):
    """Stack actor/critic towers along a leading axis; weights bf16, biases f32."""
    actor = _prep_tower(params["feat1"], params["f1v_w"], params["f1v_b"],
                        params["reg1"], obs_dim)
    critic = _prep_tower(params["feat2"], params["f2v_w"], params["f2v_b"],
                         params["reg2"], obs_dim)
    prep = {}
    for k in actor:
        a = jnp.stack([jnp.asarray(actor[k]), jnp.asarray(critic[k])], axis=0)
        if a.ndim == 2:                                   # biases: [2,N] -> [2,1,N]
            a = a[:, None, :]
        prep[k] = (a.astype(jnp.bfloat16) if k.startswith("w")
                   else a.astype(jnp.float32))
    return prep


# ----------------------------------------------------------------------------
# Deterministic parameter init (mirrors the PyTorch module's layer sizes)
# ----------------------------------------------------------------------------
def init_params(key, obs_dim, action_dim):
    keys = iter(jax.random.split(key, 64))

    def dense(d_in, d_out):
        s = 1.0 / jnp.sqrt(d_in)
        w = jax.random.uniform(next(keys), (d_in, d_out), jnp.float32, -s, s)
        b = jax.random.uniform(next(keys), (d_out,), jnp.float32, -s, s)
        return w, b

    def conv_tower():
        c1_w, c1_b = dense(8 * 8 * 1, 16)
        c2_w, c2_b = dense(4 * 4 * 16, 32)
        c3_w, c3_b = dense(3 * 3 * 32, 32)
        return dict(c1_w=c1_w, c1_b=c1_b, c2_w=c2_w, c2_b=c2_b,
                    c3_w=c3_w, c3_b=c3_b)

    def reg(d_in, d_out):
        w1, b1 = dense(d_in, 500)
        w2, b2 = dense(500, 256)
        w3, b3 = dense(256, d_out)
        return dict(w1=w1, b1=b1, w2=w2, b2=b2, w3=w3, b3=b3)

    f1v_w, f1v_b = dense(obs_dim, obs_dim)
    f2v_w, f2v_b = dense(obs_dim, obs_dim)
    return dict(
        f1v_w=f1v_w, f1v_b=f1v_b, feat1=conv_tower(),
        reg1=reg(CONV_FLAT + obs_dim, action_dim),
        f2v_w=f2v_w, f2v_b=f2v_b, feat2=conv_tower(),
        reg2=reg(CONV_FLAT + obs_dim, 1),
    )


# ----------------------------------------------------------------------------
# References for verification (pure JAX, run outside Pallas)
# ----------------------------------------------------------------------------
def _mirror_forward(x1, x2_nchw, prep, action_dim):
    """Same folded bf16 weights / same dot sequence as the kernel (f32 output)."""
    b = x1.shape[0]
    x2 = jnp.transpose(x2_nchw, (0, 2, 3, 1)).reshape(b, -1)
    x2 = jnp.pad(x2, ((0, 0), (0, X2_PAD - x2.shape[1])))
    x1b = jnp.pad(x1, ((0, 0), (0, X1_PAD - x1.shape[1]))).astype(jnp.bfloat16)
    x2b = x2.astype(jnp.bfloat16)

    def dot_f(a, w):
        return jnp.dot(a.astype(jnp.bfloat16), w,
                       preferred_element_type=jnp.float32)

    outs = []
    for t in range(2):
        h = jnp.maximum(dot_f(x2b, prep["wc1"][t]) + prep["bc1"][t, 0], 0.0)
        h = jnp.maximum(dot_f(h, prep["wc2"][t]) + prep["bc2"][t, 0], 0.0)
        fc = jnp.maximum(dot_f(h, prep["wc3"][t]) + prep["bc3"][t, 0], 0.0)
        cat = jnp.concatenate([x1b, fc.astype(jnp.bfloat16)], axis=-1)
        hh = jnp.maximum(dot_f(cat, prep["w1"][t]) + prep["b1"][t, 0], 0.0)
        hh = jnp.maximum(dot_f(hh, prep["w2"][t]) + prep["b2"][t, 0], 0.0)
        outs.append(dot_f(hh, prep["w3"][t]) + prep["b3"][t, 0])
    probs = jax.nn.softmax(outs[0][:, :action_dim], axis=-1)
    value = outs[1][:, 0]
    return probs, value


def _ref_im2col(x_nhwc, kh, kw, stride, pad):
    x = jnp.pad(x_nhwc, ((0, 0), (pad, pad), (pad, pad), (0, 0)))
    b, h, w, c = x.shape
    oh = (h - kh) // stride + 1
    ow = (w - kw) // stride + 1
    cols = []
    for i in range(kh):
        for j in range(kw):
            cols.append(x[:, i:i + stride * oh:stride,
                          j:j + stride * ow:stride, :])
    patches = jnp.stack(cols, axis=3)            # [B, OH, OW, kh*kw, C]
    return patches.reshape(b * oh * ow, kh * kw * c), oh, ow


def _ref_feature_tower(x_nchw, p):
    x = jnp.transpose(x_nchw, (0, 2, 3, 1))
    for w, b, (kh, kw, s, pd) in [
        (p["c1_w"], p["c1_b"], (8, 8, 4, 1)),
        (p["c2_w"], p["c2_b"], (4, 4, 2, 1)),
        (p["c3_w"], p["c3_b"], (3, 3, 1, 1)),
    ]:
        patches, oh, ow = _ref_im2col(x, kh, kw, s, pd)
        y = jnp.maximum(patches @ w + b, 0.0)
        x = y.reshape(x.shape[0], oh, ow, w.shape[1])
    return x.reshape(x.shape[0], -1)


def _ref_action(x1, x2, params):
    f1v = x1 @ params["f1v_w"] + params["f1v_b"]
    x = jnp.concatenate([f1v, _ref_feature_tower(x2, params["feat1"])], axis=1)
    r = params["reg1"]
    h = jnp.maximum(x @ r["w1"] + r["b1"], 0.0)
    h = jnp.maximum(h @ r["w2"] + r["b2"], 0.0)
    return jax.nn.softmax(h @ r["w3"] + r["b3"], axis=-1)


def _ref_value(x1, x2, params):
    f2v = x1 @ params["f2v_w"] + params["f2v_b"]
    x = jnp.concatenate([f2v, _ref_feature_tower(x2, params["feat2"])], axis=1)
    r = params["reg2"]
    h = jnp.maximum(x @ r["w1"] + r["b1"], 0.0)
    h = jnp.maximum(h @ r["w2"] + r["b2"], 0.0)
    return jnp.squeeze(h @ r["w3"] + r["b3"], axis=-1)


# ----------------------------------------------------------------------------
if __name__ == "__main__":
    B, OBS_DIM, ACTION_DIM = 2, 8, 6

    key = jax.random.PRNGKey(0)
    k_p, k_x1, k_x2 = jax.random.split(key, 3)
    params = init_params(k_p, OBS_DIM, ACTION_DIM)
    prep = prepare_params(params, OBS_DIM)

    x1 = jax.random.normal(k_x1, (B, OBS_DIM), jnp.float32)
    x2 = jax.random.normal(k_x2, (B, 1, IMG, IMG), jnp.float32)   # NCHW

    probs, value = jax.block_until_ready(
        actor_critic_forward(x1, x2, prep, ACTION_DIM))

    assert probs.shape == (B, ACTION_DIM)
    assert value.shape == (B,)
    assert bool(jnp.all(jnp.isfinite(probs))) and bool(jnp.all(jnp.isfinite(value)))

    # Check vs mirror reference (identical folded bf16 weights & math path;
    # kernel output is bf16, so allow bf16 output rounding).
    m_probs, m_value = _mirror_forward(x1, x2, prep, ACTION_DIM)
    assert jnp.allclose(probs, m_probs, rtol=2e-2, atol=5e-3), (probs, m_probs)
    assert jnp.allclose(value, m_value, rtol=2e-2, atol=1e-2), (value, m_value)

    # Loose check vs the original-structure f32 reference (only divergence is
    # bf16 rounding of weights/activations and the host-side Wv@W1v fold).
    r_probs = _ref_action(x1, x2, params)
    r_value = _ref_value(x1, x2, params)
    assert jnp.allclose(probs, r_probs, rtol=5e-2, atol=2e-2), (probs, r_probs)
    assert jnp.allclose(value, r_value, rtol=1e-1, atol=5e-2), (value, r_value)

    assert jnp.allclose(jnp.sum(probs, axis=-1), 1.0, atol=1e-2)

    print("KERNEL_OK")
</pallas_src>

<mosaic_0001>
module attributes {stable_mosaic.version = 11 : i64} {
  func.func @_actor_critic_kernel(%arg0: i32, %arg1: memref<16x128xbf16, #tpu.memory_space<vmem>>, %arg2: memref<16x384xbf16, #tpu.memory_space<vmem>>, %arg3: memref<1x384x256xbf16, #tpu.memory_space<vmem>>, %arg4: memref<1x1x256xf32, #tpu.memory_space<vmem>>, %arg5: memref<1x256x128xbf16, #tpu.memory_space<vmem>>, %arg6: memref<1x1x128xf32, #tpu.memory_space<vmem>>, %arg7: memref<1x128x128xbf16, #tpu.memory_space<vmem>>, %arg8: memref<1x1x128xf32, #tpu.memory_space<vmem>>, %arg9: memref<1x256x512xbf16, #tpu.memory_space<vmem>>, %arg10: memref<1x1x512xf32, #tpu.memory_space<vmem>>, %arg11: memref<1x512x256xbf16, #tpu.memory_space<vmem>>, %arg12: memref<1x1x256xf32, #tpu.memory_space<vmem>>, %arg13: memref<1x256x128xbf16, #tpu.memory_space<vmem>>, %arg14: memref<1x1x128xf32, #tpu.memory_space<vmem>>, %arg15: memref<1x16x128xbf16, #tpu.memory_space<vmem>>) attributes {dimension_semantics = [#tpu.dimension_semantics<parallel>], iteration_bounds = array<i64: 2>, scalar_prefetch = 0 : i64, scratch_operands = 0 : i64, tpu.core_type = #tpu.core_type<tc>, window_params = [{pipeline_mode = #tpu.pipeline_mode<synchronous>, transform_indices = @transform_0, window_bounds = array<i64: 16, 128>}, {pipeline_mode = #tpu.pipeline_mode<synchronous>, transform_indices = @transform_1, window_bounds = array<i64: 16, 384>}, {transform_indices = @transform_2, window_bounds = array<i64: 1, 384, 256>}, {transform_indices = @transform_3, window_bounds = array<i64: 1, 1, 256>}, {transform_indices = @transform_4, window_bounds = array<i64: 1, 256, 128>}, {transform_indices = @transform_5, window_bounds = array<i64: 1, 1, 128>}, {transform_indices = @transform_6, window_bounds = array<i64: 1, 128, 128>}, {transform_indices = @transform_7, window_bounds = array<i64: 1, 1, 128>}, {transform_indices = @transform_8, window_bounds = array<i64: 1, 256, 512>}, {transform_indices = @transform_9, window_bounds = array<i64: 1, 1, 512>}, {transform_indices = @transform_10, window_bounds = array<i64: 1, 512, 256>}, {transform_indices = @transform_11, window_bounds = array<i64: 1, 1, 256>}, {transform_indices = @transform_12, window_bounds = array<i64: 1, 256, 128>}, {transform_indices = @transform_13, window_bounds = array<i64: 1, 1, 128>}, {transform_indices = @transform_14, window_bounds = array<i64: 1, 16, 128>}]} {
    %c0 = arith.constant 0 : index
    %c0_0 = arith.constant 0 : index
    %0 = vector.load %arg2[%c0, %c0_0] : memref<16x384xbf16, #tpu.memory_space<vmem>>, vector<16x384xbf16>
    %c0_1 = arith.constant 0 : index
    %c0_2 = arith.constant 0 : index
    %c0_3 = arith.constant 0 : index
    %1 = vector.load %arg3[%c0_1, %c0_2, %c0_3] : memref<1x384x256xbf16, #tpu.memory_space<vmem>>, vector<1x384x256xbf16>
    %2 = vector.shape_cast %1 : vector<1x384x256xbf16> to vector<384x256xbf16>
    %cst = arith.constant dense<0.000000e+00> : vector<16x256xf32>
    %3 = tpu.matmul %0, %2, %cst {dimension_numbers = #tpu.dot_dimension_numbers<[1], [0], [0], [1], [0, 0, 1, 1], [], []>} : vector<16x384xbf16>, vector<384x256xbf16>, vector<16x256xf32> -> vector<16x256xf32>
    %c0_4 = arith.constant 0 : index
    %c0_5 = arith.constant 0 : index
    %c0_6 = arith.constant 0 : index
    %4 = vector.load %arg4[%c0_4, %c0_5, %c0_6] : memref<1x1x256xf32, #tpu.memory_space<vmem>>, vector<1x1x256xf32>
    %5 = vector.shape_cast %4 : vector<1x1x256xf32> to vector<1x256xf32>
    %6 = vector.broadcast %5 : vector<1x256xf32> to vector<16x256xf32>
    %7 = arith.addf %3, %6 : vector<16x256xf32>
    %cst_7 = arith.constant 0.000000e+00 : f32
    %8 = vector.broadcast %cst_7 : f32 to vector<16x256xf32>
    %9 = arith.maximumf %7, %8 : vector<16x256xf32>
    %10 = arith.truncf %9 : vector<16x256xf32> to vector<16x256xbf16>
    %c0_8 = arith.constant 0 : index
    %c0_9 = arith.constant 0 : index
    %c0_10 = arith.constant 0 : index
    %11 = vector.load %arg5[%c0_8, %c0_9, %c0_10] : memref<1x256x128xbf16, #tpu.memory_space<vmem>>, vector<1x256x128xbf16>
    %12 = vector.shape_cast %11 : vector<1x256x128xbf16> to vector<256x128xbf16>
    %cst_11 = arith.constant dense<0.000000e+00> : vector<16x128xf32>
    %13 = tpu.matmul %10, %12, %cst_11 {dimension_numbers = #tpu.dot_dimension_numbers<[1], [0], [0], [1], [0, 0, 1, 1], [], []>} : vector<16x256xbf16>, vector<256x128xbf16>, vector<16x128xf32> -> vector<16x128xf32>
    %c0_12 = arith.constant 0 : index
    %c0_13 = arith.constant 0 : index
    %c0_14 = arith.constant 0 : index
    %14 = vector.load %arg6[%c0_12, %c0_13, %c0_14] : memref<1x1x128xf32, #tpu.memory_space<vmem>>, vector<1x1x128xf32>
    %15 = vector.shape_cast %14 : vector<1x1x128xf32> to vector<1x128xf32>
    %16 = vector.broadcast %15 : vector<1x128xf32> to vector<16x128xf32>
    %17 = arith.addf %13, %16 : vector<16x128xf32>
    %cst_15 = arith.constant 0.000000e+00 : f32
    %18 = vector.broadcast %cst_15 : f32 to vector<16x128xf32>
    %19 = arith.maximumf %17, %18 : vector<16x128xf32>
    %20 = arith.truncf %19 : vector<16x128xf32> to vector<16x128xbf16>
    %c0_16 = arith.constant 0 : index
    %c0_17 = arith.constant 0 : index
    %c0_18 = arith.constant 0 : index
    %21 = vector.load %arg7[%c0_16, %c0_17, %c0_18] : memref<1x128x128xbf16, #tpu.memory_space<vmem>>, vector<1x128x128xbf16>
    %22 = vector.shape_cast %21 : vector<1x128x128xbf16> to vector<128x128xbf16>
    %cst_19 = arith.constant dense<0.000000e+00> : vector<16x128xf32>
    %23 = tpu.matmul %20, %22, %cst_19 {dimension_numbers = #tpu.dot_dimension_numbers<[1], [0], [0], [1], [0, 0, 1, 1], [], []>} : vector<16x128xbf16>, vector<128x128xbf16>, vector<16x128xf32> -> vector<16x128xf32>
    %c0_20 = arith.constant 0 : index
    %c0_21 = arith.constant 0 : index
    %c0_22 = arith.constant 0 : index
    %24 = vector.load %arg8[%c0_20, %c0_21, %c0_22] : memref<1x1x128xf32, #tpu.memory_space<vmem>>, vector<1x1x128xf32>
    %25 = vector.shape_cast %24 : vector<1x1x128xf32> to vector<1x128xf32>
    %26 = vector.broadcast %25 : vector<1x128xf32> to vector<16x128xf32>
    %27 = arith.addf %23, %26 : vector<16x128xf32>
    %cst_23 = arith.constant 0.000000e+00 : f32
    %28 = vector.broadcast %cst_23 : f32 to vector<16x128xf32>
    %29 = arith.maximumf %27, %28 : vector<16x128xf32>
    %c0_24 = arith.constant 0 : index
    %c0_25 = arith.constant 0 : index
    %30 = vector.load %arg1[%c0_24, %c0_25] : memref<16x128xbf16, #tpu.memory_space<vmem>>, vector<16x128xbf16>
    %31 = arith.truncf %29 : vector<16x128xf32> to vector<16x128xbf16>
    %32 = tpu.concatenate %30, %31 in 1 : vector<16x128xbf16>, vector<16x128xbf16> -> vector<16x256xbf16>
    %c0_26 = arith.constant 0 : index
    %c0_27 = arith.constant 0 : index
    %c0_28 = arith.constant 0 : index
    %33 = vector.load %arg9[%c0_26, %c0_27, %c0_28] : memref<1x256x512xbf16, #tpu.memory_space<vmem>>, vector<1x256x512xbf16>
    %34 = vector.shape_cast %33 : vector<1x256x512xbf16> to vector<256x512xbf16>
    %cst_29 = arith.constant dense<0.000000e+00> : vector<16x512xf32>
    %35 = tpu.matmul %32, %34, %cst_29 {dimension_numbers = #tpu.dot_dimension_numbers<[1], [0], [0], [1], [0, 0, 1, 1], [], []>} : vector<16x256xbf16>, vector<256x512xbf16>, vector<16x512xf32> -> vector<16x512xf32>
    %c0_30 = arith.constant 0 : index
    %c0_31 = arith.constant 0 : index
    %c0_32 = arith.constant 0 : index
    %36 = vector.load %arg10[%c0_30, %c0_31, %c0_32] : memref<1x1x512xf32, #tpu.memory_space<vmem>>, vector<1x1x512xf32>
    %37 = vector.shape_cast %36 : vector<1x1x512xf32> to vector<1x512xf32>
    %38 = vector.broadcast %37 : vector<1x512xf32> to vector<16x512xf32>
    %39 = arith.addf %35, %38 : vector<16x512xf32>
    %cst_33 = arith.constant 0.000000e+00 : f32
    %40 = vector.broadcast %cst_33 : f32 to vector<16x512xf32>
    %41 = arith.maximumf %39, %40 : vector<16x512xf32>
    %42 = arith.truncf %41 : vector<16x512xf32> to vector<16x512xbf16>
    %c0_34 = arith.constant 0 : index
    %c0_35 = arith.constant 0 : index
    %c0_36 = arith.constant 0 : index
    %43 = vector.load %arg11[%c0_34, %c0_35, %c0_36] : memref<1x512x256xbf16, #tpu.memory_space<vmem>>, vector<1x512x256xbf16>
    %44 = vector.shape_cast %43 : vector<1x512x256xbf16> to vector<512x256xbf16>
    %cst_37 = arith.constant dense<0.000000e+00> : vector<16x256xf32>
    %45 = tpu.matmul %42, %44, %cst_37 {dimension_numbers = #tpu.dot_dimension_numbers<[1], [0], [0], [1], [0, 0, 1, 1], [], []>} : vector<16x512xbf16>, vector<512x256xbf16>, vector<16x256xf32> -> vector<16x256xf32>
    %c0_38 = arith.constant 0 : index
    %c0_39 = arith.constant 0 : index
    %c0_40 = arith.constant 0 : index
    %46 = vector.load %arg12[%c0_38, %c0_39, %c0_40] : memref<1x1x256xf32, #tpu.memory_space<vmem>>, vector<1x1x256xf32>
    %47 = vector.shape_cast %46 : vector<1x1x256xf32> to vector<1x256xf32>
    %48 = vector.broadcast %47 : vector<1x256xf32> to vector<16x256xf32>
    %49 = arith.addf %45, %48 : vector<16x256xf32>
    %cst_41 = arith.constant 0.000000e+00 : f32
    %50 = vector.broadcast %cst_41 : f32 to vector<16x256xf32>
    %51 = arith.maximumf %49, %50 : vector<16x256xf32>
    %52 = arith.truncf %51 : vector<16x256xf32> to vector<16x256xbf16>
    %c0_42 = arith.constant 0 : index
    %c0_43 = arith.constant 0 : index
    %c0_44 = arith.constant 0 : index
    %53 = vector.load %arg13[%c0_42, %c0_43, %c0_44] : memref<1x256x128xbf16, #tpu.memory_space<vmem>>, vector<1x256x128xbf16>
    %54 = vector.shape_cast %53 : vector<1x256x128xbf16> to vector<256x128xbf16>
    %cst_45 = arith.constant dense<0.000000e+00> : vector<16x128xf32>
    %55 = tpu.matmul %52, %54, %cst_45 {dimension_numbers = #tpu.dot_dimension_numbers<[1], [0], [0], [1], [0, 0, 1, 1], [], []>} : vector<16x256xbf16>, vector<256x128xbf16>, vector<16x128xf32> -> vector<16x128xf32>
    %c0_46 = arith.constant 0 : index
    %c0_47 = arith.constant 0 : index
    %c0_48 = arith.constant 0 : index
    %56 = vector.load %arg14[%c0_46, %c0_47, %c0_48] : memref<1x1x128xf32, #tpu.memory_space<vmem>>, vector<1x1x128xf32>
    %57 = vector.shape_cast %56 : vector<1x1x128xf32> to vector<1x128xf32>
    %58 = vector.broadcast %57 : vector<1x128xf32> to vector<16x128xf32>
    %59 = arith.addf %55, %58 : vector<16x128xf32>
    %c0_i32 = arith.constant 0 : i32
    %60 = arith.cmpi eq, %arg0, %c0_i32 : i32
    %61 = arith.extui %60 : i1 to i32
    %c0_i32_49 = arith.constant 0 : i32
    %62 = arith.cmpi ne, %61, %c0_i32_49 : i32
    scf.if %62 {
      %66 = tpu.iota {dimensions = array<i32: 1>} : vector<16x128xi32>
      %c6_i32 = arith.constant 6 : i32
      %67 = vector.broadcast %c6_i32 : i32 to vector<16x128xi32>
      %68 = arith.cmpi slt, %66, %67 : vector<16x128xi32>
      %cst_51 = arith.constant -1.000000e+30 : f32
      %69 = vector.broadcast %cst_51 : f32 to vector<16x128xf32>
      %70 = arith.select %68, %59, %69 : vector<16x128xi1>, vector<16x128xf32>
      %cst_52 = arith.constant dense<0xFF800000> : vector<16xf32>
      %71 = vector.multi_reduction <maximumf>, %70, %cst_52 [1] : vector<16x128xf32> to vector<16xf32>
      %72 = vector.shape_cast %71 : vector<16xf32> to vector<16x1xf32>
      %73 = vector.broadcast %72 : vector<16x1xf32> to vector<16x128xf32>
      %74 = arith.subf %70, %73 : vector<16x128xf32>
      %75 = math.exp %74 : vector<16x128xf32>
      %cst_53 = arith.constant 0.000000e+00 : f32
      %76 = vector.broadcast %cst_53 : f32 to vector<16x128xf32>
      %77 = arith.select %68, %75, %76 : vector<16x128xi1>, vector<16x128xf32>
      %cst_54 = arith.constant dense<0.000000e+00> : vector<16xf32>
      %78 = vector.multi_reduction <add>, %77, %cst_54 [1] : vector<16x128xf32> to vector<16xf32>
      %79 = vector.shape_cast %78 : vector<16xf32> to vector<16x1xf32>
      %80 = vector.broadcast %79 : vector<16x1xf32> to vector<16x128xf32>
      %81 = arith.divf %77, %80 : vector<16x128xf32>
      %82 = vector.shape_cast %81 : vector<16x128xf32> to vector<1x16x128xf32>
      %83 = arith.truncf %82 : vector<1x16x128xf32> to vector<1x16x128xbf16>
      %c0_55 = arith.constant 0 : index
      %c0_56 = arith.constant 0 : index
      %c0_57 = arith.constant 0 : index
      %84 = vector.load %arg15[%c0_55, %c0_56, %c0_57] : memref<1x16x128xbf16, #tpu.memory_space<vmem>>, vector<1x16x128xbf16>
      tpu.vector_store %arg15[%c0_55, %c0_56, %c0_57], %83 {strides = array<i32>} : memref<1x16x128xbf16, #tpu.memory_space<vmem>>, vector<1x16x128xbf16>,
    } else {
    }
    %c1_i32 = arith.constant 1 : i32
    %63 = arith.cmpi eq, %arg0, %c1_i32 : i32
    %64 = arith.extui %63 : i1 to i32
    %c0_i32_50 = arith.constant 0 : i32
    %65 = arith.cmpi ne, %64, %c0_i32_50 : i32
    scf.if %65 {
      %66 = vector.shape_cast %59 : vector<16x128xf32> to vector<1x16x128xf32>
      %67 = arith.truncf %66 : vector<1x16x128xf32> to vector<1x16x128xbf16>
      %c0_51 = arith.constant 0 : index
      %c0_52 = arith.constant 0 : index
      %c0_53 = arith.constant 0 : index
      %68 = vector.load %arg15[%c0_51, %c0_52, %c0_53] : memref<1x16x128xbf16, #tpu.memory_space<vmem>>, vector<1x16x128xbf16>
      tpu.vector_store %arg15[%c0_51, %c0_52, %c0_53], %67 {strides = array<i32>} : memref<1x16x128xbf16, #tpu.memory_space<vmem>>, vector<1x16x128xbf16>,
    } else {
    }
    return
  }
  func.func @transform_0(%arg0: i32) -> (i32, i32) {
    %c0_i32 = arith.constant 0 : i32
    %c0_i32_0 = arith.constant 0 : i32
    %c0_i32_1 = arith.constant 0 : i32
    return %c0_i32, %c0_i32_0 : i32, i32
  }
  func.func @transform_1(%arg0: i32) -> (i32, i32) {
    %c0_i32 = arith.constant 0 : i32
    %c0_i32_0 = arith.constant 0 : i32
    %c0_i32_1 = arith.constant 0 : i32
    return %c0_i32, %c0_i32_0 : i32, i32
  }
  func.func @transform_2(%arg0: i32) -> (i32, i32, i32) {
    %c0_i32 = arith.constant 0 : i32
    %c0_i32_0 = arith.constant 0 : i32
    %c0_i32_1 = arith.constant 0 : i32
    return %arg0, %c0_i32, %c0_i32_0 : i32, i32, i32
  }
  func.func @transform_3(%arg0: i32) -> (i32, i32, i32) {
    %c0_i32 = arith.constant 0 : i32
    %c0_i32_0 = arith.constant 0 : i32
    %c0_i32_1 = arith.constant 0 : i32
    return %arg0, %c0_i32, %c0_i32_0 : i32, i32, i32
  }
  func.func @transform_4(%arg0: i32) -> (i32, i32, i32) {
    %c0_i32 = arith.constant 0 : i32
    %c0_i32_0 = arith.constant 0 : i32
    %c0_i32_1 = arith.constant 0 : i32
    return %arg0, %c0_i32, %c0_i32_0 : i32, i32, i32
  }
  func.func @transform_5(%arg0: i32) -> (i32, i32, i32) {
    %c0_i32 = arith.constant 0 : i32
    %c0_i32_0 = arith.constant 0 : i32
    %c0_i32_1 = arith.constant 0 : i32
    return %arg0, %c0_i32, %c0_i32_0 : i32, i32, i32
  }
  func.func @transform_6(%arg0: i32) -> (i32, i32, i32) {
    %c0_i32 = arith.constant 0 : i32
    %c0_i32_0 = arith.constant 0 : i32
    %c0_i32_1 = arith.constant 0 : i32
    return %arg0, %c0_i32, %c0_i32_0 : i32, i32, i32
  }
  func.func @transform_7(%arg0: i32) -> (i32, i32, i32) {
    %c0_i32 = arith.constant 0 : i32
    %c0_i32_0 = arith.constant 0 : i32
    %c0_i32_1 = arith.constant 0 : i32
    return %arg0, %c0_i32, %c0_i32_0 : i32, i32, i32
  }
  func.func @transform_8(%arg0: i32) -> (i32, i32, i32) {
    %c0_i32 = arith.constant 0 : i32
    %c0_i32_0 = arith.constant 0 : i32
    %c0_i32_1 = arith.constant 0 : i32
    return %arg0, %c0_i32, %c0_i32_0 : i32, i32, i32
  }
  func.func @transform_9(%arg0: i32) -> (i32, i32, i32) {
    %c0_i32 = arith.constant 0 : i32
    %c0_i32_0 = arith.constant 0 : i32
    %c0_i32_1 = arith.constant 0 : i32
    return %arg0, %c0_i32, %c0_i32_0 : i32, i32, i32
  }
  func.func @transform_10(%arg0: i32) -> (i32, i32, i32) {
    %c0_i32 = arith.constant 0 : i32
    %c0_i32_0 = arith.constant 0 : i32
    %c0_i32_1 = arith.constant 0 : i32
    return %arg0, %c0_i32, %c0_i32_0 : i32, i32, i32
  }
  func.func @transform_11(%arg0: i32) -> (i32, i32, i32) {
    %c0_i32 = arith.constant 0 : i32
    %c0_i32_0 = arith.constant 0 : i32
    %c0_i32_1 = arith.constant 0 : i32
    return %arg0, %c0_i32, %c0_i32_0 : i32, i32, i32
  }
  func.func @transform_12(%arg0: i32) -> (i32, i32, i32) {
    %c0_i32 = arith.constant 0 : i32
    %c0_i32_0 = arith.constant 0 : i32
    %c0_i32_1 = arith.constant 0 : i32
    return %arg0, %c0_i32, %c0_i32_0 : i32, i32, i32
  }
  func.func @transform_13(%arg0: i32) -> (i32, i32, i32) {
    %c0_i32 = arith.constant 0 : i32
    %c0_i32_0 = arith.constant 0 : i32
    %c0_i32_1 = arith.constant 0 : i32
    return %arg0, %c0_i32, %c0_i32_0 : i32, i32, i32
  }
  func.func @transform_14(%arg0: i32) -> (i32, i32, i32) {
    %c0_i32 = arith.constant 0 : i32
    %c0_i32_0 = arith.constant 0 : i32
    %c0_i32_1 = arith.constant 0 : i32
    return %arg0, %c0_i32, %c0_i32_0 : i32, i32, i32
  }
}

</mosaic_0001>

<llo_original>
// kernel: actor_critic_forward.1
$region0: #{actor_critic_forward.1}
  #allocation0 [shape = 'u32[]', space=smem, size = 0x4, offset = 0x4, fixed_abs, tag = 'smem constant byte address 0x4 - core index']
  #allocation1 [shape = 'u32[144,128]{1,0:T(1,128)}', space=vmem, size = 0x12000, scoped, tag = 'internal scratch']
  %s0 = inlined_call_operand.vmem [shape: bf16[16,128], index: 0, kind: input, shape index: {}]
  %s1 = inlined_call_operand.vmem [shape: bf16[16,384], index: 1, kind: input, shape index: {}]
  %s2 = inlined_call_operand.hbm [shape: bf16[2,384,256], index: 2, kind: input, shape index: {}]
  %s3 = inlined_call_operand.vmem [shape: f32[2,1,256], index: 3, kind: input, shape index: {}]
  %s4 = inlined_call_operand.hbm [shape: bf16[2,256,128], index: 4, kind: input, shape index: {}]
  %s5 = inlined_call_operand.vmem [shape: f32[2,1,128], index: 5, kind: input, shape index: {}]
  %s6 = inlined_call_operand.vmem [shape: bf16[2,128,128], index: 6, kind: input, shape index: {}]
  %s7 = inlined_call_operand.vmem [shape: f32[2,1,128], index: 7, kind: input, shape index: {}]
  %s8 = inlined_call_operand.hbm [shape: bf16[2,256,512], index: 8, kind: input, shape index: {}]
  %s9 = inlined_call_operand.vmem [shape: f32[2,1,512], index: 9, kind: input, shape index: {}]
  %s10 = inlined_call_operand.hbm [shape: bf16[2,512,256], index: 10, kind: input, shape index: {}]
  %s11 = inlined_call_operand.vmem [shape: f32[2,1,256], index: 11, kind: input, shape index: {}]
  %s12 = inlined_call_operand.hbm [shape: bf16[2,256,128], index: 12, kind: input, shape index: {}]
  %s13 = inlined_call_operand.vmem [shape: f32[2,1,128], index: 13, kind: input, shape index: {}]
  %s14 = inlined_call_operand.vmem [shape: bf16[2,16,128], index: 14, kind: output, shape index: {}]
  %s15 = sld [smem:[#allocation0]]
  $region117: #{actor_critic_forward.1} parent=0
    _
  %s17 = ssub.s32 1, %s15
  %s18 = scalar_select 0, %s17, %s15
  $region1: #{actor_critic_forward.1} parent=0
    #allocation2 [shape = 'u8[393216]{0}', space=vmem, size = 0x60000, scoped, tag = 'input window, operand 2']
    #allocation3 [shape = 's32[2]{0}', space=sflag, size = 0x8, scoped, tag = 'scoped memory for actor_critic_forward.1']
    #allocation4 [shape = 'u8[131072]{0}', space=vmem, size = 0x20000, scoped, tag = 'input window, operand 4']
    #allocation5 [shape = 's32[2]{0}', space=sflag, size = 0x8, scoped, tag = 'scoped memory for actor_critic_forward.1']
    #allocation6 [shape = 'u8[524288]{0}', space=vmem, size = 0x80000, scoped, tag = 'input window, operand 8']
    #allocation7 [shape = 'u8[524288]{0}', space=vmem, size = 0x80000, scoped, tag = 'input window, operand 10']
    #allocation8 [shape = 's32[2]{0}', space=sflag, size = 0x8, scoped, tag = 'scoped memory for actor_critic_forward.1']
    #allocation9 [shape = 'u8[131072]{0}', space=vmem, size = 0x20000, scoped, tag = 'input window, operand 12']
    %19 = vsyncpa [#allocation3], 0
    %s20 = scalar_lea.sflag [#allocation3], 1
    %21 = vsyncpa %s20, 0
    %22 = vsyncpa [#allocation5], 0
    %s23 = scalar_lea.sflag [#allocation5], 1
    %24 = vsyncpa %s23, 0
    %25 = vsyncpa [#allocation8], 0
    %s26 = scalar_lea.sflag [#allocation8], 1
    %27 = vsyncpa %s26, 0
    loop: start=0, step=1, limit=4
    $region2: #{actor_critic_forward.1} parent=1 // loop_pre_header
      _
    $region3: #{actor_critic_forward.1} parent=1 // loop_header
      %s29 = sphi 0, %s33
      %p30 = scmp.ge.s32.totalorder %s29, 4
      %s37 = sphi 0, %s37
      %s39 = sphi 0, %s37
      %s40 = sphi 0, %s39
      %s54 = sphi 0, %s40
      %s58 = sphi 0, %s58
      %s60 = sphi 0, %s58
      %s61 = sphi 0, %s60
      %s75 = sphi 0, %s61
      %s81 = sphi 0, %s83
      %s84 = sphi 0, %s81
      %s85 = sphi 0, %s84
      %s101 = sphi 0, %s85
      %s107 = sphi 0, %s109
      %s110 = sphi 0, %s107
      %s111 = sphi 0, %s110
      %s127 = sphi 0, %s111
      %s133 = sphi 0, %s135
      %s136 = sphi 0, %s133
      %s137 = sphi 0, %s136
      %s153 = sphi 0, %s137
      %s159 = sphi 0, %s161
      %s162 = sphi 0, %s159
      %s163 = sphi 0, %s162
      %s179 = sphi 0, %s163
      %s185 = sphi 0, %s187
      %s188 = sphi 0, %s185
      %s189 = sphi 0, %s188
      %s205 = sphi 0, %s189
      %s211 = sphi 0, %s213
      %s214 = sphi 0, %s211
      %s215 = sphi 0, %s214
      %s231 = sphi 0, %s215
      %s237 = sphi 0, %s239
      %s240 = sphi 0, %s237
      %s241 = sphi 0, %s240
      %s257 = sphi 0, %s241
      %s263 = sphi 0, %s265
      %s266 = sphi 0, %s263
      %s267 = sphi 0, %s266
      %s283 = sphi 0, %s267
      %s289 = sphi 0, %s291
      %s292 = sphi 0, %s289
      %s293 = sphi 0, %s292
      %s309 = sphi 0, %s293
      %s315 = sphi 0, %s317
      %s318 = sphi 0, %s315
      %s319 = sphi 0, %s318
      %s335 = sphi 0, %s319
      %s341 = sphi 0, %s343
      %s344 = sphi 0, %s341
      %s345 = sphi 0, %s344
      %s361 = sphi 0, %s345
      %s367 = sphi 0, %s369
      %s370 = sphi 0, %s367
      %s371 = sphi 0, %s370
      %s387 = sphi 0, %s371
      %s393 = sphi 0, %s395
      %s396 = sphi 0, %s393
      %s397 = sphi 0, %s396
      %s413 = sphi 0, %s397
    $region4: #{actor_critic_forward.1} parent=1 // loop_header_branch
      %32 = sbr.rel (%p30) target = $region8
    $region5: #{actor_critic_forward.1} parent=1 // loop_body
      %s34 = ssub.s32 %s29, 1
      %s35 = ssub.s32 %s29, 2
      %s36 = sadd.s32 %s29, 1
      %s38 = sadd.s32 %s37, 1
      %p41 = scmp.eq.s32.totalorder %s29, 1
      %p42 = scmp.ne.s32.totalorder %s37, %s39
      %p43 = scmp.eq.s32.totalorder %s29, 0
      %p44 = por %p42, %p43
      %p45 = scmp.ne.s32.totalorder %s37, %s39
      %p46 = scmp.eq.s32.totalorder %s34, 1
      %p47 = por %p45, %p46
      %p48 = scmp.ne.s32.totalorder %s39, %s40
      %p49 = scmp.eq.s32.totalorder %s34, 0
      %p50 = por %p48, %p49
      %p51 = scmp.ne.s32.totalorder %s39, %s40
      %p52 = scmp.eq.s32.totalorder %s35, 1
      %p53 = por %p51, %p52
      %p55 = scmp.ne.s32.totalorder %s40, %s54
      %p56 = scmp.eq.s32.totalorder %s35, 0
      %p57 = por %p55, %p56
      %s59 = sadd.s32 %s58, 1
      %p62 = scmp.eq.s32.totalorder %s29, 1
      %p63 = scmp.ne.s32.totalorder %s58, %s60
      %p64 = scmp.eq.s32.totalorder %s29, 0
      %p65 = por %p63, %p64
      %p66 = scmp.ne.s32.totalorder %s58, %s60
      %p67 = scmp.eq.s32.totalorder %s34, 1
      %p68 = por %p66, %p67
      %p69 = scmp.ne.s32.totalorder %s60, %s61
      %p70 = scmp.eq.s32.totalorder %s34, 0
      %p71 = por %p69, %p70
      %p72 = scmp.ne.s32.totalorder %s60, %s61
      %p73 = scmp.eq.s32.totalorder %s35, 1
      %p74 = por %p72, %p73
      %p76 = scmp.ne.s32.totalorder %s61, %s75
      %p77 = scmp.eq.s32.totalorder %s35, 0
      %p78 = por %p76, %p77
      %s79 = ssub.s32 %s29, %s36
      %p80 = scmp.eq.s32.totalorder %s79, 0
      %s82 = sadd.s32 %s81, 1
      %s83 = scalar_select %p80, %s81, %s82
      %p86 = pneg %p80
      %p87 = scmp.eq.s32.totalorder %s29, 1
      %p88 = por %p86, %p87
      %p89 = scmp.ne.s32.totalorder %s81, %s84
      %p90 = scmp.eq.s32.totalorder %s29, 0
      %p91 = por %p89, %p90
      %p92 = scmp.ne.s32.totalorder %s81, %s84
      %p93 = scmp.eq.s32.totalorder %s34, 1
      %p94 = por %p92, %p93
      %p95 = scmp.ne.s32.totalorder %s84, %s85
      %p96 = scmp.eq.s32.totalorder %s34, 0
      %p97 = por %p95, %p96
      %p98 = scmp.ne.s32.totalorder %s84, %s85
      %p99 = scmp.eq.s32.totalorder %s35, 1
      %p100 = por %p98, %p99
      %p102 = scmp.ne.s32.totalorder %s85, %s101
      %p103 = scmp.eq.s32.totalorder %s35, 0
      %p104 = por %p102, %p103
      %s105 = ssub.s32 %s29, %s36
      %p106 = scmp.eq.s32.totalorder %s105, 0
      %s108 = sadd.s32 %s107, 1
      %s109 = scalar_select %p106, %s107, %s108
      %p112 = pneg %p106
      %p113 = scmp.eq.s32.totalorder %s29, 1
      %p114 = por %p112, %p113
      %p115 = scmp.ne.s32.totalorder %s107, %s110
      %p116 = scmp.eq.s32.totalorder %s29, 0
      %p117 = por %p115, %p116
      %p118 = scmp.ne.s32.totalorder %s107, %s110
      %p119 = scmp.eq.s32.totalorder %s34, 1
      %p120 = por %p118, %p119
      %p121 = scmp.ne.s32.totalorder %s110, %s111
      %p122 = scmp.eq.s32.totalorder %s34, 0
      %p123 = por %p121, %p122
      %p124 = scmp.ne.s32.totalorder %s110, %s111
      %p125 = scmp.eq.s32.totalorder %s35, 1
      %p126 = por %p124, %p125
      %p128 = scmp.ne.s32.totalorder %s111, %s127
      %p129 = scmp.eq.s32.totalorder %s35, 0
      %p130 = por %p128, %p129
      %s131 = ssub.s32 %s29, %s36
      %p132 = scmp.eq.s32.totalorder %s131, 0
      %s134 = sadd.s32 %s133, 1
      %s135 = scalar_select %p132, %s133, %s134
      %p138 = pneg %p132
      %p139 = scmp.eq.s32.totalorder %s29, 1
      %p140 = por %p138, %p139
      %p141 = scmp.ne.s32.totalorder %s133, %s136
      %p142 = scmp.eq.s32.totalorder %s29, 0
      %p143 = por %p141, %p142
      %p144 = scmp.ne.s32.totalorder %s133, %s136
      %p145 = scmp.eq.s32.totalorder %s34, 1
      %p146 = por %p144, %p145
      %p147 = scmp.ne.s32.totalorder %s136, %s137
      %p148 = scmp.eq.s32.totalorder %s34, 0
      %p149 = por %p147, %p148
      %p150 = scmp.ne.s32.totalorder %s136, %s137
      %p151 = scmp.eq.s32.totalorder %s35, 1
      %p152 = por %p150, %p151
      %p154 = scmp.ne.s32.totalorder %s137, %s153
      %p155 = scmp.eq.s32.totalorder %s35, 0
      %p156 = por %p154, %p155
      %s157 = ssub.s32 %s29, %s36
      %p158 = scmp.eq.s32.totalorder %s157, 0
      %s160 = sadd.s32 %s159, 1
      %s161 = scalar_select %p158, %s159, %s160
      %p164 = pneg %p158
      %p165 = scmp.eq.s32.totalorder %s29, 1
      %p166 = por %p164, %p165
      %p167 = scmp.ne.s32.totalorder %s159, %s162
      %p168 = scmp.eq.s32.totalorder %s29, 0
      %p169 = por %p167, %p168
      %p170 = scmp.ne.s32.totalorder %s159, %s162
      %p171 = scmp.eq.s32.totalorder %s34, 1
      %p172 = por %p170, %p171
      %p173 = scmp.ne.s32.totalorder %s162, %s163
      %p174 = scmp.eq.s32.totalorder %s34, 0
      %p175 = por %p173, %p174
      %p176 = scmp.ne.s32.totalorder %s162, %s163
      %p177 = scmp.eq.s32.totalorder %s35, 1
      %p178 = por %p176, %p177
      %p180 = scmp.ne.s32.totalorder %s163, %s179
      %p181 = scmp.eq.s32.totalorder %s35, 0
      %p182 = por %p180, %p181
      %s183 = ssub.s32 %s29, %s36
      %p184 = scmp.eq.s32.totalorder %s183, 0
      %s186 = sadd.s32 %s185, 1
      %s187 = scalar_select %p184, %s185, %s186
      %p190 = pneg %p184
      %p191 = scmp.eq.s32.totalorder %s29, 1
      %p192 = por %p190, %p191
      %p193 = scmp.ne.s32.totalorder %s185, %s188
      %p194 = scmp.eq.s32.totalorder %s29, 0
      %p195 = por %p193, %p194
      %p196 = scmp.ne.s32.totalorder %s185, %s188
      %p197 = scmp.eq.s32.totalorder %s34, 1
      %p198 = por %p196, %p197
      %p199 = scmp.ne.s32.totalorder %s188, %s189
      %p200 = scmp.eq.s32.totalorder %s34, 0
      %p201 = por %p199, %p200
      %p202 = scmp.ne.s32.totalorder %s188, %s189
      %p203 = scmp.eq.s32.totalorder %s35, 1
      %p204 = por %p202, %p203
      %p206 = scmp.ne.s32.totalorder %s189, %s205
      %p207 = scmp.eq.s32.totalorder %s35, 0
      %p208 = por %p206, %p207
      %s209 = ssub.s32 %s29, %s36
      %p210 = scmp.eq.s32.totalorder %s209, 0
      %s212 = sadd.s32 %s211, 1
      %s213 = scalar_select %p210, %s211, %s212
      %p216 = pneg %p210
      %p217 = scmp.eq.s32.totalorder %s29, 1
      %p218 = por %p216, %p217
      %p219 = scmp.ne.s32.totalorder %s211, %s214
      %p220 = scmp.eq.s32.totalorder %s29, 0
      %p221 = por %p219, %p220
      %p222 = scmp.ne.s32.totalorder %s211, %s214
      %p223 = scmp.eq.s32.totalorder %s34, 1
      %p224 = por %p222, %p223
      %p225 = scmp.ne.s32.totalorder %s214, %s215
      %p226 = scmp.eq.s32.totalorder %s34, 0
      %p227 = por %p225, %p226
      %p228 = scmp.ne.s32.totalorder %s214, %s215
      %p229 = scmp.eq.s32.totalorder %s35, 1
      %p230 = por %p228, %p229
      %p232 = scmp.ne.s32.totalorder %s215, %s231
      %p233 = scmp.eq.s32.totalorder %s35, 0
      %p234 = por %p232, %p233
      %s235 = ssub.s32 %s29, %s36
      %p236 = scmp.eq.s32.totalorder %s235, 0
      %s238 = sadd.s32 %s237, 1
      %s239 = scalar_select %p236, %s237, %s238
      %p242 = pneg %p236
      %p243 = scmp.eq.s32.totalorder %s29, 1
      %p244 = por %p242, %p243
      %p245 = scmp.ne.s32.totalorder %s237, %s240
      %p246 = scmp.eq.s32.totalorder %s29, 0
      %p247 = por %p245, %p246
      %p248 = scmp.ne.s32.totalorder %s237, %s240
      %p249 = scmp.eq.s32.totalorder %s34, 1
      %p250 = por %p248, %p249
      %p251 = scmp.ne.s32.totalorder %s240, %s241
      %p252 = scmp.eq.s32.totalorder %s34, 0
      %p253 = por %p251, %p252
      %p254 = scmp.ne.s32.totalorder %s240, %s241
      %p255 = scmp.eq.s32.totalorder %s35, 1
      %p256 = por %p254, %p255
      %p258 = scmp.ne.s32.totalorder %s241, %s257
      %p259 = scmp.eq.s32.totalorder %s35, 0
      %p260 = por %p258, %p259
      %s261 = ssub.s32 %s29, %s36
      %p262 = scmp.eq.s32.totalorder %s261, 0
      %s264 = sadd.s32 %s263, 1
      %s265 = scalar_select %p262, %s263, %s264
      %p268 = pneg %p262
      %p269 = scmp.eq.s32.totalorder %s29, 1
      %p270 = por %p268, %p269
      %p271 = scmp.ne.s32.totalorder %s263, %s266
      %p272 = scmp.eq.s32.totalorder %s29, 0
      %p273 = por %p271, %p272
      %p274 = scmp.ne.s32.totalorder %s263, %s266
      %p275 = scmp.eq.s32.totalorder %s34, 1
      %p276 = por %p274, %p275
      %p277 = scmp.ne.s32.totalorder %s266, %s267
      %p278 = scmp.eq.s32.totalorder %s34, 0
      %p279 = por %p277, %p278
      %p280 = scmp.ne.s32.totalorder %s266, %s267
      %p281 = scmp.eq.s32.totalorder %s35, 1
      %p282 = por %p280, %p281
      %p284 = scmp.ne.s32.totalorder %s267, %s283
      %p285 = scmp.eq.s32.totalorder %s35, 0
      %p286 = por %p284, %p285
      %s287 = ssub.s32 %s29, %s36
      %p288 = scmp.eq.s32.totalorder %s287, 0
      %s290 = sadd.s32 %s289, 1
      %s291 = scalar_select %p288, %s289, %s290
      %p294 = pneg %p288
      %p295 = scmp.eq.s32.totalorder %s29, 1
      %p296 = por %p294, %p295
      %p297 = scmp.ne.s32.totalorder %s289, %s292
      %p298 = scmp.eq.s32.totalorder %s29, 0
      %p299 = por %p297, %p298
      %p300 = scmp.ne.s32.totalorder %s289, %s292
      %p301 = scmp.eq.s32.totalorder %s34, 1
      %p302 = por %p300, %p301
      %p303 = scmp.ne.s32.totalorder %s292, %s293
      %p304 = scmp.eq.s32.totalorder %s34, 0
      %p305 = por %p303, %p304
      %p306 = scmp.ne.s32.totalorder %s292, %s293
      %p307 = scmp.eq.s32.totalorder %s35, 1
      %p308 = por %p306, %p307
      %p310 = scmp.ne.s32.totalorder %s293, %s309
      %p311 = scmp.eq.s32.totalorder %s35, 0
      %p312 = por %p310, %p311
      %s313 = ssub.s32 %s29, %s36
      %p314 = scmp.eq.s32.totalorder %s313, 0
      %s316 = sadd.s32 %s315, 1
      %s317 = scalar_select %p314, %s315, %s316
      %p320 = pneg %p314
      %p321 = scmp.eq.s32.totalorder %s29, 1
      %p322 = por %p320, %p321
      %p323 = scmp.ne.s32.totalorder %s315, %s318
      %p324 = scmp.eq.s32.totalorder %s29, 0
      %p325 = por %p323, %p324
      %p326 = scmp.ne.s32.totalorder %s315, %s318
      %p327 = scmp.eq.s32.totalorder %s34, 1
      %p328 = por %p326, %p327
      %p329 = scmp.ne.s32.totalorder %s318, %s319
      %p330 = scmp.eq.s32.totalorder %s34, 0
      %p331 = por %p329, %p330
      %p332 = scmp.ne.s32.totalorder %s318, %s319
      %p333 = scmp.eq.s32.totalorder %s35, 1
      %p334 = por %p332, %p333
      %p336 = scmp.ne.s32.totalorder %s319, %s335
      %p337 = scmp.eq.s32.totalorder %s35, 0
      %p338 = por %p336, %p337
      %s339 = ssub.s32 %s29, %s36
      %p340 = scmp.eq.s32.totalorder %s339, 0
      %s342 = sadd.s32 %s341, 1
      %s343 = scalar_select %p340, %s341, %s342
      %p346 = pneg %p340
      %p347 = scmp.eq.s32.totalorder %s29, 1
      %p348 = por %p346, %p347
      %p349 = scmp.ne.s32.totalorder %s341, %s344
      %p350 = scmp.eq.s32.totalorder %s29, 0
      %p351 = por %p349, %p350
      %p352 = scmp.ne.s32.totalorder %s341, %s344
      %p353 = scmp.eq.s32.totalorder %s34, 1
      %p354 = por %p352, %p353
      %p355 = scmp.ne.s32.totalorder %s344, %s345
      %p356 = scmp.eq.s32.totalorder %s34, 0
      %p357 = por %p355, %p356
      %p358 = scmp.ne.s32.totalorder %s344, %s345
      %p359 = scmp.eq.s32.totalorder %s35, 1
      %p360 = por %p358, %p359
      %p362 = scmp.ne.s32.totalorder %s345, %s361
      %p363 = scmp.eq.s32.totalorder %s35, 0
      %p364 = por %p362, %p363
      %s365 = ssub.s32 %s29, %s36
      %p366 = scmp.eq.s32.totalorder %s365, 0
      %s368 = sadd.s32 %s367, 1
      %s369 = scalar_select %p366, %s367, %s368
      %p372 = pneg %p366
      %p373 = scmp.eq.s32.totalorder %s29, 1
      %p374 = por %p372, %p373
      %p375 = scmp.ne.s32.totalorder %s367, %s370
      %p376 = scmp.eq.s32.totalorder %s29, 0
      %p377 = por %p375, %p376
      %p378 = scmp.ne.s32.totalorder %s367, %s370
      %p379 = scmp.eq.s32.totalorder %s34, 1
      %p380 = por %p378, %p379
      %p381 = scmp.ne.s32.totalorder %s370, %s371
      %p382 = scmp.eq.s32.totalorder %s34, 0
      %p383 = por %p381, %p382
      %p384 = scmp.ne.s32.totalorder %s370, %s371
      %p385 = scmp.eq.s32.totalorder %s35, 1
      %p386 = por %p384, %p385
      %p388 = scmp.ne.s32.totalorder %s371, %s387
      %p389 = scmp.eq.s32.totalorder %s35, 0
      %p390 = por %p388, %p389
      %s391 = ssub.s32 %s29, %s36
      %p392 = scmp.eq.s32.totalorder %s391, 0
      %s394 = sadd.s32 %s393, 1
      %s395 = scalar_select %p392, %s393, %s394
      %p398 = pneg %p392
      %p399 = scmp.eq.s32.totalorder %s29, 1
      %p400 = por %p398, %p399
      %p401 = scmp.ne.s32.totalorder %s393, %s396
      %p402 = scmp.eq.s32.totalorder %s29, 0
      %p403 = por %p401, %p402
      %p404 = scmp.ne.s32.totalorder %s393, %s396
      %p405 = scmp.eq.s32.totalorder %s34, 1
      %p406 = por %p404, %p405
      %p407 = scmp.ne.s32.totalorder %s396, %s397
      %p408 = scmp.eq.s32.totalorder %s34, 0
      %p409 = por %p407, %p408
      %p410 = scmp.ne.s32.totalorder %s396, %s397
      %p411 = scmp.eq.s32.totalorder %s35, 1
      %p412 = por %p410, %p411
      %p414 = scmp.ne.s32.totalorder %s397, %s413
      %p415 = scmp.eq.s32.totalorder %s35, 0
      %p416 = por %p414, %p415
      %p417 = scmp.le.s32.totalorder 1, %s29
      %p418 = scmp.lt.s32.totalorder %s29, 3
      %p419 = pnand %p417, %p418
      %p420 = pneg %p419
      // Predicated region
      $region9: #{actor_critic_forward.1} parent=5 // pred_check
        _
      $region10: #{actor_critic_forward.1} parent=5 // pred_check_branch
        %422 = sbr.rel (%p419) target = $region12
      $region11: #{actor_critic_forward.1} parent=5 // pred_region
        %s423 = ssub.s32 %s29, 1
        // Predicated region
        $region13: #{actor_critic_forward.1} parent=11 // pred_check
          %p424 = pneg %p50
        $region14: #{actor_critic_forward.1} parent=11 // pred_check_branch
          %426 = sbr.rel (%p424) target = $region16
        $region15: #{actor_critic_forward.1} parent=11 // pred_region
          _
        $region16: #{actor_critic_forward.1} parent=11 // pred_fallthru
          _
        // Predicated region
        $region17: #{actor_critic_forward.1} parent=11 // pred_check
          %p427 = pneg %p71
        $region18: #{actor_critic_forward.1} parent=11 // pred_check_branch
          %429 = sbr.rel (%p427) target = $region20
        $region19: #{actor_critic_forward.1} parent=11 // pred_region
          _
        $region20: #{actor_critic_forward.1} parent=11 // pred_fallthru
          _
      $region12: #{actor_critic_forward.1} parent=5 // pred_fallthru
        _
      %p430 = scmp.lt.s32.totalorder %s29, 2
      // Predicated region
      $region21: #{actor_critic_forward.1} parent=5 // pred_check
        %p431 = pneg %p430
      $region22: #{actor_critic_forward.1} parent=5 // pred_check_branch
        %433 = sbr.rel (%p431) target = $region24
      $region23: #{actor_critic_forward.1} parent=5 // pred_region
        // Predicated region
        $region25: #{actor_critic_forward.1} parent=23 // pred_check
          %p434 = pneg %p91
        $region26: #{actor_critic_forward.1} parent=23 // pred_check_branch
          %436 = sbr.rel (%p434) target = $region28
        $region27: #{actor_critic_forward.1} parent=23 // pred_region
          %s437 = sand.u32 %s81, 1
          %s438 = scalar_lea.sflag [#allocation3], %s437
          %s439 = sand.u32 %s81, 1
          %s440 = smul.addr %s439, 384
          %s441 = scalar_lea.vmem [#allocation2], %s440
          %s443 = ssub.s32 6144, 6144
          %444 = vsyncadd %s438, %s443
          %s445 = smul.addr %s29, 96
          %s446 = smul.addr %s445, 64
          %s447 = scalar_lea.hbm %s2, %s446
          %s448 = sshll.u32 %s441, 4
          %s449 = int_to_ptr.vmem [resolvable:$true] %s448
          %454 = dma.hbm_to_vmem [thread:$0]  %s447, 6144, %s449, %s438, 128, 128, 8
        $region28: #{actor_critic_forward.1} parent=23 // pred_fallthru
          _
        // Predicated region
        $region29: #{actor_critic_forward.1} parent=23 // pred_check
          %p455 = pneg %p117
        $region30: #{actor_critic_forward.1} parent=23 // pred_check_branch
          %457 = sbr.rel (%p455) target = $region32
        $region31: #{actor_critic_forward.1} parent=23 // pred_region
          %p458 = scmp.lt.s32.totalorder %s29, 1
          %s459 = scalar_select %p458, %s29, 1
          %s460 = smul.addr %s459, 2
          %s461 = scalar_lea.vmem %s3, %s460
        $region32: #{actor_critic_forward.1} parent=23 // pred_fallthru
          _
        // Predicated region
        $region33: #{actor_critic_forward.1} parent=23 // pred_check
          %p462 = pneg %p143
        $region34: #{actor_critic_forward.1} parent=23 // pred_check_branch
          %464 = sbr.rel (%p462) target = $region36
        $region35: #{actor_critic_forward.1} parent=23 // pred_region
          %s465 = sand.u32 %s29, 1
          %s466 = scalar_lea.sflag [#allocation5], %s465
          %s467 = sand.u32 %s133, 1
          %s468 = smul.addr %s467, 128
          %s469 = scalar_lea.vmem [#allocation4], %s468
          %s471 = ssub.s32 2048, 2048
          %472 = vsyncadd %s466, %s471
          %s473 = smul.addr %s29, 32
          %s474 = smul.addr %s473, 64
          %s475 = scalar_lea.hbm %s4, %s474
          %s476 = sshll.u32 %s469, 4
          %s477 = int_to_ptr.vmem [resolvable:$true] %s476
          %482 = dma.hbm_to_vmem [thread:$0]  %s475, 2048, %s477, %s466, 64, 64, 4
        $region36: #{actor_critic_forward.1} parent=23 // pred_fallthru
          _
        // Predicated region
        $region37: #{actor_critic_forward.1} parent=23 // pred_check
          %p483 = pneg %p169
        $region38: #{actor_critic_forward.1} parent=23 // pred_check_branch
          %485 = sbr.rel (%p483) target = $region40
        $region39: #{actor_critic_forward.1} parent=23 // pred_region
          %p486 = scmp.lt.s32.totalorder %s29, 1
          %s487 = scalar_select %p486, %s29, 1
          %s488 = scalar_lea.vmem %s5, %s487
        $region40: #{actor_critic_forward.1} parent=23 // pred_fallthru
          _
        // Predicated region
        $region41: #{actor_critic_forward.1} parent=23 // pred_check
          %p489 = pneg %p195
        $region42: #{actor_critic_forward.1} parent=23 // pred_check_branch
          %491 = sbr.rel (%p489) target = $region44
        $region43: #{actor_critic_forward.1} parent=23 // pred_region
          %p492 = scmp.lt.s32.totalorder %s29, 1
          %s493 = scalar_select %p492, %s29, 1
          %s494 = smul.addr %s493, 16
          %s495 = smul.addr %s494, 4
          %s496 = scalar_lea.vmem %s6, %s495
        $region44: #{actor_critic_forward.1} parent=23 // pred_fallthru
          _
        // Predicated region
        $region45: #{actor_critic_forward.1} parent=23 // pred_check
          %p497 = pneg %p221
        $region46: #{actor_critic_forward.1} parent=23 // pred_check_branch
          %499 = sbr.rel (%p497) target = $region48
        $region47: #{actor_critic_forward.1} parent=23 // pred_region
          %p500 = scmp.lt.s32.totalorder %s29, 1
          %s501 = scalar_select %p500, %s29, 1
          %s502 = scalar_lea.vmem %s7, %s501
        $region48: #{actor_critic_forward.1} parent=23 // pred_fallthru
          _
        // Predicated region
        $region49: #{actor_critic_forward.1} parent=23 // pred_check
          %p503 = pneg %p247
        $region50: #{actor_critic_forward.1} parent=23 // pred_check_branch
          %505 = sbr.rel (%p503) target = $region52
        $region51: #{actor_critic_forward.1} parent=23 // pred_region
          %s506 = sand.u32 %s29, 1
          %s507 = scalar_lea.sflag [#allocation5], %s506
          %s508 = sand.u32 %s237, 1
          %s509 = smul.addr %s508, 512
          %s510 = scalar_lea.vmem [#allocation6], %s509
          %s512 = ssub.s32 8192, 8192
          %513 = vsyncadd %s507, %s512
          %s514 = smul.addr %s29, 128
          %s515 = smul.addr %s514, 64
          %s516 = scalar_lea.hbm %s8, %s515
          %s517 = sshll.u32 %s510, 4
          %s518 = int_to_ptr.vmem [resolvable:$true] %s517
          %523 = dma.hbm_to_vmem [thread:$0]  %s516, 8192, %s518, %s507, 256, 256, 16
        $region52: #{actor_critic_forward.1} parent=23 // pred_fallthru
          _
        // Predicated region
        $region53: #{actor_critic_forward.1} parent=23 // pred_check
          %p524 = pneg %p273
        $region54: #{actor_critic_forward.1} parent=23 // pred_check_branch
          %526 = sbr.rel (%p524) target = $region56
        $region55: #{actor_critic_forward.1} parent=23 // pred_region
          %p527 = scmp.lt.s32.totalorder %s29, 1
          %s528 = scalar_select %p527, %s29, 1
          %s529 = smul.addr %s528, 4
          %s530 = scalar_lea.vmem %s9, %s529
        $region56: #{actor_critic_forward.1} parent=23 // pred_fallthru
          _
        // Predicated region
        $region57: #{actor_critic_forward.1} parent=23 // pred_check
          %p531 = pneg %p299
        $region58: #{actor_critic_forward.1} parent=23 // pred_check_branch
          %533 = sbr.rel (%p531) target = $region60
        $region59: #{actor_critic_forward.1} parent=23 // pred_region
          %s534 = sand.u32 %s29, 1
          %s535 = scalar_lea.sflag [#allocation8], %s534
          %s536 = sand.u32 %s289, 1
          %s537 = smul.addr %s536, 512
          %s538 = scalar_lea.vmem [#allocation7], %s537
          %s540 = ssub.s32 8192, 8192
          %541 = vsyncadd %s535, %s540
          %s542 = smul.addr %s29, 128
          %s543 = smul.addr %s542, 64
          %s544 = scalar_lea.hbm %s10, %s543
          %s545 = sshll.u32 %s538, 4
          %s546 = int_to_ptr.vmem [resolvable:$true] %s545
          %551 = dma.hbm_to_vmem [thread:$0]  %s544, 8192, %s546, %s535, 128, 128, 8
        $region60: #{actor_critic_forward.1} parent=23 // pred_fallthru
          _
        // Predicated region
        $region61: #{actor_critic_forward.1} parent=23 // pred_check
          %p552 = pneg %p325
        $region62: #{actor_critic_forward.1} parent=23 // pred_check_branch
          %554 = sbr.rel (%p552) target = $region64
        $region63: #{actor_critic_forward.1} parent=23 // pred_region
          %p555 = scmp.lt.s32.totalorder %s29, 1
          %s556 = scalar_select %p555, %s29, 1
          %s557 = smul.addr %s556, 2
          %s558 = scalar_lea.vmem %s11, %s557
        $region64: #{actor_critic_forward.1} parent=23 // pred_fallthru
          _
        // Predicated region
        $region65: #{actor_critic_forward.1} parent=23 // pred_check
          %p559 = pneg %p351
        $region66: #{actor_critic_forward.1} parent=23 // pred_check_branch
          %561 = sbr.rel (%p559) target = $region68
        $region67: #{actor_critic_forward.1} parent=23 // pred_region
          %s562 = sand.u32 %s29, 1
          %s563 = scalar_lea.sflag [#allocation8], %s562
          %s564 = sand.u32 %s341, 1
          %s565 = smul.addr %s564, 128
          %s566 = scalar_lea.vmem [#allocation9], %s565
          %s568 = ssub.s32 2048, 2048
          %569 = vsyncadd %s563, %s568
          %s570 = smul.addr %s29, 32
          %s571 = smul.addr %s570, 64
          %s572 = scalar_lea.hbm %s12, %s571
          %s573 = sshll.u32 %s566, 4
          %s574 = int_to_ptr.vmem [resolvable:$true] %s573
          %579 = dma.hbm_to_vmem [thread:$0]  %s572, 2048, %s574, %s563, 64, 64, 4
        $region68: #{actor_critic_forward.1} parent=23 // pred_fallthru
          _
        // Predicated region
        $region69: #{actor_critic_forward.1} parent=23 // pred_check
          %p580 = pneg %p377
        $region70: #{actor_critic_forward.1} parent=23 // pred_check_branch
          %582 = sbr.rel (%p580) target = $region72
        $region71: #{actor_critic_forward.1} parent=23 // pred_region
          %p583 = scmp.lt.s32.totalorder %s29, 1
          %s584 = scalar_select %p583, %s29, 1
          %s585 = scalar_lea.vmem %s13, %s584
        $region72: #{actor_critic_forward.1} parent=23 // pred_fallthru
          _
      $region24: #{actor_critic_forward.1} parent=5 // pred_fallthru
        _
      %p586 = scmp.le.s32.totalorder 1, %s29
      %p587 = scmp.lt.s32.totalorder %s29, 3
      %p588 = pnand %p586, %p587
      %p589 = pneg %p588
      // Predicated region
      $region73: #{actor_critic_forward.1} parent=5 // pred_check
        _
      $region74: #{actor_critic_forward.1} parent=5 // pred_check_branch
        %591 = sbr.rel (%p588) target = $region76
      $region75: #{actor_critic_forward.1} parent=5 // pred_region
        %s592 = ssub.s32 %s29, 1
        %s593 = sand.u32 %s84, 1
        %s594 = scalar_lea.sflag [#allocation3], %s593
        %s595 = sand.u32 %s84, 1
        %s596 = smul.addr %s595, 384
        %s597 = scalar_lea.vmem [#allocation2], %s596
        // Predicated region
        $region77: #{actor_critic_forward.1} parent=75 // pred_check
          %p598 = pneg %p97
        $region78: #{actor_critic_forward.1} parent=75 // pred_check_branch
          %600 = sbr.rel (%p598) target = $region80
        $region79: #{actor_critic_forward.1} parent=75 // pred_region
          %601 = dma.done %s594, 6144
        $region80: #{actor_critic_forward.1} parent=75 // pred_fallthru
          _
        %s602 = sand.u32 %s34, 1
        %s603 = scalar_lea.sflag [#allocation5], %s602
        %s604 = sand.u32 %s136, 1
        %s605 = smul.addr %s604, 128
        %s606 = scalar_lea.vmem [#allocation4], %s605
        // Predicated region
        $region81: #{actor_critic_forward.1} parent=75 // pred_check
          %p607 = pneg %p149
        $region82: #{actor_critic_forward.1} parent=75 // pred_check_branch
          %609 = sbr.rel (%p607) target = $region84
        $region83: #{actor_critic_forward.1} parent=75 // pred_region
          %610 = dma.done %s603, 2048
        $region84: #{actor_critic_forward.1} parent=75 // pred_fallthru
          _
        %s611 = sand.u32 %s34, 1
        %s612 = scalar_lea.sflag [#allocation5], %s611
        %s613 = sand.u32 %s240, 1
        %s614 = smul.addr %s613, 512
        %s615 = scalar_lea.vmem [#allocation6], %s614
        // Predicated region
        $region85: #{actor_critic_forward.1} parent=75 // pred_check
          %p616 = pneg %p253
        $region86: #{actor_critic_forward.1} parent=75 // pred_check_branch
          %618 = sbr.rel (%p616) target = $region88
        $region87: #{actor_critic_forward.1} parent=75 // pred_region
          %619 = dma.done %s612, 8192
        $region88: #{actor_critic_forward.1} parent=75 // pred_fallthru
          _
        %s620 = sand.u32 %s34, 1
        %s621 = scalar_lea.sflag [#allocation8], %s620
        %s622 = sand.u32 %s292, 1
        %s623 = smul.addr %s622, 512
        %s624 = scalar_lea.vmem [#allocation7], %s623
        // Predicated region
        $region89: #{actor_critic_forward.1} parent=75 // pred_check
          %p625 = pneg %p305
        $region90: #{actor_critic_forward.1} parent=75 // pred_check_branch
          %627 = sbr.rel (%p625) target = $region92
        $region91: #{actor_critic_forward.1} parent=75 // pred_region
          %628 = dma.done %s621, 8192
        $region92: #{actor_critic_forward.1} parent=75 // pred_fallthru
          _
        %s629 = sand.u32 %s34, 1
        %s630 = scalar_lea.sflag [#allocation8], %s629
        %s631 = sand.u32 %s344, 1
        %s632 = smul.addr %s631, 128
        %s633 = scalar_lea.vmem [#allocation9], %s632
        // Predicated region
        $region93: #{actor_critic_forward.1} parent=75 // pred_check
          %p634 = pneg %p357
        $region94: #{actor_critic_forward.1} parent=75 // pred_check_branch
          %636 = sbr.rel (%p634) target = $region96
        $region95: #{actor_critic_forward.1} parent=75 // pred_region
          %637 = dma.done %s630, 2048
        $region96: #{actor_critic_forward.1} parent=75 // pred_fallthru
          _
        %p638 = pneg %p50
        %p639 = pneg %p47
        %p640 = pneg %p71
        %p641 = pneg %p68
        %s642 = sand.u32 %s84, 1
        %s643 = scalar_lea.sflag [#allocation3], %s642
        %s644 = sand.u32 %s84, 1
        %s645 = smul.addr %s644, 384
        %s646 = scalar_lea.vmem [#allocation2], %s645
        %p647 = pneg %p97
        %p648 = pneg %p94
        %p649 = scmp.lt.s32.totalorder %s34, 1
        %s650 = scalar_select %p649, %s34, 1
        %s651 = smul.addr %s650, 2
        %s652 = scalar_lea.vmem %s3, %s651
        %p653 = pneg %p123
        %p654 = pneg %p120
        %s655 = sand.u32 %s34, 1
        %s656 = scalar_lea.sflag [#allocation5], %s655
        %s657 = sand.u32 %s136, 1
        %s658 = smul.addr %s657, 128
        %s659 = scalar_lea.vmem [#allocation4], %s658
        %p660 = pneg %p149
        %p661 = pneg %p146
        %p662 = scmp.lt.s32.totalorder %s34, 1
        %s663 = scalar_select %p662, %s34, 1
        %s664 = scalar_lea.vmem %s5, %s663
        %p665 = pneg %p175
        %p666 = pneg %p172
        %p667 = scmp.lt.s32.totalorder %s34, 1
        %s668 = scalar_select %p667, %s34, 1
        %s669 = smul.addr %s668, 16
        %s670 = smul.addr %s669, 4
        %s671 = scalar_lea.vmem %s6, %s670
        %p672 = pneg %p201
        %p673 = pneg %p198
        %p674 = scmp.lt.s32.totalorder %s34, 1
        %s675 = scalar_select %p674, %s34, 1
        %s676 = scalar_lea.vmem %s7, %s675
        %p677 = pneg %p227
        %p678 = pneg %p224
        %s679 = sand.u32 %s34, 1
        %s680 = scalar_lea.sflag [#allocation5], %s679
        %s681 = sand.u32 %s240, 1
        %s682 = smul.addr %s681, 512
        %s683 = scalar_lea.vmem [#allocation6], %s682
        %p684 = pneg %p253
        %p685 = pneg %p250
        %p686 = scmp.lt.s32.totalorder %s34, 1
        %s687 = scalar_select %p686, %s34, 1
        %s688 = smul.addr %s687, 4
        %s689 = scalar_lea.vmem %s9, %s688
        %p690 = pneg %p279
        %p691 = pneg %p276
        %s692 = sand.u32 %s34, 1
        %s693 = scalar_lea.sflag [#allocation8], %s692
        %s694 = sand.u32 %s292, 1
        %s695 = smul.addr %s694, 512
        %s696 = scalar_lea.vmem [#allocation7], %s695
        %p697 = pneg %p305
        %p698 = pneg %p302
        %p699 = scmp.lt.s32.totalorder %s34, 1
        %s700 = scalar_select %p699, %s34, 1
        %s701 = smul.addr %s700, 2
        %s702 = scalar_lea.vmem %s11, %s701
        %p703 = pneg %p331
        %p704 = pneg %p328
        %s705 = sand.u32 %s34, 1
        %s706 = scalar_lea.sflag [#allocation8], %s705
        %s707 = sand.u32 %s344, 1
        %s708 = smul.addr %s707, 128
        %s709 = scalar_lea.vmem [#allocation9], %s708
        %p710 = pneg %p357
        %p711 = pneg %p354
        %p712 = scmp.lt.s32.totalorder %s34, 1
        %s713 = scalar_select %p712, %s34, 1
        %s714 = scalar_lea.vmem %s13, %s713
        %p715 = pneg %p383
        %p716 = pneg %p380
        %p717 = pneg %p409
        %p718 = pneg %p406
        %p719 = scmp.lt.s32.totalorder %s34, 1
        %s720 = scalar_select %p719, %s34, 1
        %s721 = smul.addr %s720, 2
        %s722 = smul.addr %s721, 4
        %s723 = scalar_lea.vmem %s14, %s722
        %p724 = scmp.lt.s32.totalorder %s34, 1
        %s725 = scalar_select %p724, %s34, 1
        %s726 = smul.addr %s725, 2
        %s727 = scalar_lea.vmem %s3, %s726
        %p728 = scmp.lt.s32.totalorder %s34, 1
        %s729 = scalar_select %p728, %s34, 1
        %s730 = scalar_lea.vmem %s5, %s729
        %p731 = scmp.lt.s32.totalorder %s34, 1
        %s732 = scalar_select %p731, %s34, 1
        %s733 = smul.addr %s732, 16
        %s734 = smul.addr %s733, 4
        %s735 = scalar_lea.vmem %s6, %s734
        %p736 = scmp.lt.s32.totalorder %s34, 1
        %s737 = scalar_select %p736, %s34, 1
        %s738 = scalar_lea.vmem %s7, %s737
        %p739 = scmp.lt.s32.totalorder %s34, 1
        %s740 = scalar_select %p739, %s34, 1
        %s741 = smul.addr %s740, 4
        %s742 = scalar_lea.vmem %s9, %s741
        %p743 = scmp.lt.s32.totalorder %s34, 1
        %s744 = scalar_select %p743, %s34, 1
        %s745 = smul.addr %s744, 2
        %s746 = scalar_lea.vmem %s11, %s745
        %p747 = scmp.lt.s32.totalorder %s34, 1
        %s748 = scalar_select %p747, %s34, 1
        %s749 = scalar_lea.vmem %s13, %s748
        %p750 = scmp.lt.s32.totalorder %s34, 1
        %s751 = scalar_select %p750, %s34, 1
        %s752 = smul.addr %s751, 2
        %s753 = smul.addr %s752, 4
        %s754 = scalar_lea.vmem %s14, %s753
        %v756 = vld [vmem:[%s1] sm:$0xff]
        %v757 = vld [vmem:[%s1 + $0x8] sm:$0xf]
        %v758 = vld [vmem:[%s1 + $0xc] sm:$0xff]
        %v759 = vld [vmem:[%s1 + $0x14] sm:$0xf]
        %v760 = vld [vmem:[%s597] sm:$0xff]
        %v761 = vld [vmem:[%s597 + $0x8] sm:$0xff]
        %v762 = vld [vmem:[%s597 + $0x10] sm:$0xff]
        %v763 = vld [vmem:[%s597 + $0x18] sm:$0xff]
        %v764 = vld [vmem:[%s597 + $0x20] sm:$0xff]
        %v765 = vld [vmem:[%s597 + $0x28] sm:$0xff]
        %v766 = vld [vmem:[%s597 + $0x30] sm:$0xff]
        %v767 = vld [vmem:[%s597 + $0x38] sm:$0xff]
        %v768 = vld [vmem:[%s597 + $0x40] sm:$0xff]
        %v769 = vld [vmem:[%s597 + $0x48] sm:$0xff]
        %v770 = vld [vmem:[%s597 + $0x50] sm:$0xff]
        %v771 = vld [vmem:[%s597 + $0x58] sm:$0xff]
        %v772 = vld [vmem:[%s597 + $0x60] sm:$0xff]
        %v773 = vld [vmem:[%s597 + $0x68] sm:$0xff]
        %v774 = vld [vmem:[%s597 + $0x70] sm:$0xff]
        %v775 = vld [vmem:[%s597 + $0x78] sm:$0xff]
        %v776 = vld [vmem:[%s597 + $0x80] sm:$0xff]
        %v777 = vld [vmem:[%s597 + $0x88] sm:$0xff]
        %v778 = vld [vmem:[%s597 + $0x90] sm:$0xff]
        %v779 = vld [vmem:[%s597 + $0x98] sm:$0xff]
        %v780 = vld [vmem:[%s597 + $0xa0] sm:$0xff]
        %v781 = vld [vmem:[%s597 + $0xa8] sm:$0xff]
        %v782 = vld [vmem:[%s597 + $0xb0] sm:$0xff]
        %v783 = vld [vmem:[%s597 + $0xb8] sm:$0xff]
        %v784 = vld [vmem:[%s597 + $0xc0] sm:$0xff]
        %v785 = vld [vmem:[%s597 + $0xc8] sm:$0xff]
        %v786 = vld [vmem:[%s597 + $0xd0] sm:$0xff]
        %v787 = vld [vmem:[%s597 + $0xd8] sm:$0xff]
        %v788 = vld [vmem:[%s597 + $0xe0] sm:$0xff]
        %v789 = vld [vmem:[%s597 + $0xe8] sm:$0xff]
        %v790 = vld [vmem:[%s597 + $0xf0] sm:$0xff]
        %v791 = vld [vmem:[%s597 + $0xf8] sm:$0xff]
        %v792 = vld [vmem:[%s597 + $0x100] sm:$0xff]
        %v793 = vld [vmem:[%s597 + $0x108] sm:$0xff]
        %v794 = vld [vmem:[%s597 + $0x110] sm:$0xff]
        %v795 = vld [vmem:[%s597 + $0x118] sm:$0xff]
        %v796 = vld [vmem:[%s597 + $0x120] sm:$0xff]
        %v797 = vld [vmem:[%s597 + $0x128] sm:$0xff]
        %v798 = vld [vmem:[%s597 + $0x130] sm:$0xff]
        %v799 = vld [vmem:[%s597 + $0x138] sm:$0xff]
        %v800 = vld [vmem:[%s597 + $0x140] sm:$0xff]
        %v801 = vld [vmem:[%s597 + $0x148] sm:$0xff]
        %v802 = vld [vmem:[%s597 + $0x150] sm:$0xff]
        %v803 = vld [vmem:[%s597 + $0x158] sm:$0xff]
        %v804 = vld [vmem:[%s597 + $0x160] sm:$0xff]
        %v805 = vld [vmem:[%s597 + $0x168] sm:$0xff]
        %v806 = vld [vmem:[%s597 + $0x170] sm:$0xff]
        %v807 = vld [vmem:[%s597 + $0x178] sm:$0xff]
        %v808 = vld [vmem:[%s727] sm:$0x3]
        %v810 = vlaneseq
        %v811 = vshrl.u32 %v810, 7
        %v812 = vsub.s32 0, %v811
        %v813 = vrot.slane %v808, %v812
        %v814 = vlaneseq
        %v815 = vshrl.u32 %v814, 7
        %v816 = vsub.s32 1, %v815
        %v817 = vrot.slane %v808, %v816
        %v824 = vunpack.c.l.b16 %v756
        %v825 = vunpack.c.h.b16 %v756
        %v826 = vunpack.c.l.b16 %v757
        %v827 = vunpack.c.l.b16 %v758
        %v828 = vunpack.c.h.b16 %v758
        %v829 = vunpack.c.l.b16 %v759
        %v830 = vpack.c.b16 %v827, %v824
        %v831 = vpack.c.b16 %v828, %v825
        %v832 = vpack.c.b16 %v829, %v826
        %v884 = vunpack.c.l.b16 %v760
        %v885 = vunpack.c.h.b16 %v760
        %v886 = vunpack.c.l.b16 %v761
        %v887 = vunpack.c.h.b16 %v761
        %v888 = vunpack.c.l.b16 %v762
        %v889 = vunpack.c.h.b16 %v762
        %v890 = vunpack.c.l.b16 %v763
        %v891 = vunpack.c.h.b16 %v763
        %v892 = vunpack.c.l.b16 %v764
        %v893 = vunpack.c.h.b16 %v764
        %v894 = vunpack.c.l.b16 %v765
        %v895 = vunpack.c.h.b16 %v765
        %v896 = vunpack.c.l.b16 %v766
        %v897 = vunpack.c.h.b16 %v766
        %v898 = vunpack.c.l.b16 %v767
        %v899 = vunpack.c.h.b16 %v767
        %v900 = vunpack.c.l.b16 %v768
        %v901 = vunpack.c.h.b16 %v768
        %v902 = vunpack.c.l.b16 %v769
        %v903 = vunpack.c.h.b16 %v769
        %v904 = vunpack.c.l.b16 %v770
        %v905 = vunpack.c.h.b16 %v770
        %v906 = vunpack.c.l.b16 %v771
        %v907 = vunpack.c.h.b16 %v771
        %v908 = vunpack.c.l.b16 %v772
        %v909 = vunpack.c.h.b16 %v772
        %v910 = vunpack.c.l.b16 %v773
        %v911 = vunpack.c.h.b16 %v773
        %v912 = vunpack.c.l.b16 %v774
        %v913 = vunpack.c.h.b16 %v774
        %v914 = vunpack.c.l.b16 %v775
        %v915 = vunpack.c.h.b16 %v775
        %v916 = vunpack.c.l.b16 %v776
        %v917 = vunpack.c.h.b16 %v776
        %v918 = vunpack.c.l.b16 %v777
        %v919 = vunpack.c.h.b16 %v777
        %v920 = vunpack.c.l.b16 %v778
        %v921 = vunpack.c.h.b16 %v778
        %v922 = vunpack.c.l.b16 %v779
        %v923 = vunpack.c.h.b16 %v779
        %v924 = vunpack.c.l.b16 %v780
        %v925 = vunpack.c.h.b16 %v780
        %v926 = vunpack.c.l.b16 %v781
        %v927 = vunpack.c.h.b16 %v781
        %v928 = vunpack.c.l.b16 %v782
        %v929 = vunpack.c.h.b16 %v782
        %v930 = vunpack.c.l.b16 %v783
        %v931 = vunpack.c.h.b16 %v783
        %v932 = vunpack.c.l.b16 %v784
        %v933 = vunpack.c.h.b16 %v784
        %v934 = vunpack.c.l.b16 %v785
        %v935 = vunpack.c.h.b16 %v785
        %v936 = vunpack.c.l.b16 %v786
        %v937 = vunpack.c.h.b16 %v786
        %v938 = vunpack.c.l.b16 %v787
        %v939 = vunpack.c.h.b16 %v787
        %v940 = vunpack.c.l.b16 %v788
        %v941 = vunpack.c.h.b16 %v788
        %v942 = vunpack.c.l.b16 %v789
        %v943 = vunpack.c.h.b16 %v789
        %v944 = vunpack.c.l.b16 %v790
        %v945 = vunpack.c.h.b16 %v790
        %v946 = vunpack.c.l.b16 %v791
        %v947 = vunpack.c.h.b16 %v791
        %v948 = vunpack.c.l.b16 %v792
        %v949 = vunpack.c.h.b16 %v792
        %v950 = vunpack.c.l.b16 %v793
        %v951 = vunpack.c.h.b16 %v793
        %v952 = vunpack.c.l.b16 %v794
        %v953 = vunpack.c.h.b16 %v794
        %v954 = vunpack.c.l.b16 %v795
        %v955 = vunpack.c.h.b16 %v795
        %v956 = vunpack.c.l.b16 %v796
        %v957 = vunpack.c.h.b16 %v796
        %v958 = vunpack.c.l.b16 %v797
        %v959 = vunpack.c.h.b16 %v797
        %v960 = vunpack.c.l.b16 %v798
        %v961 = vunpack.c.h.b16 %v798
        %v962 = vunpack.c.l.b16 %v799
        %v963 = vunpack.c.h.b16 %v799
        %v964 = vunpack.c.l.b16 %v800
        %v965 = vunpack.c.h.b16 %v800
        %v966 = vunpack.c.l.b16 %v801
        %v967 = vunpack.c.h.b16 %v801
        %v968 = vunpack.c.l.b16 %v802
        %v969 = vunpack.c.h.b16 %v802
        %v970 = vunpack.c.l.b16 %v803
        %v971 = vunpack.c.h.b16 %v803
        %v972 = vunpack.c.l.b16 %v804
        %v973 = vunpack.c.h.b16 %v804
        %v974 = vunpack.c.l.b16 %v805
        %v975 = vunpack.c.h.b16 %v805
        %v976 = vunpack.c.l.b16 %v806
        %v977 = vunpack.c.h.b16 %v806
        %v978 = vunpack.c.l.b16 %v807
        %v979 = vunpack.c.h.b16 %v807
        %v980 = vpack.c.b16 %v886, %v884
        %v981 = vpack.c.b16 %v887, %v885
        %v982 = vpack.c.b16 %v890, %v888
        %v983 = vpack.c.b16 %v891, %v889
        %v984 = vpack.c.b16 %v894, %v892
        %v985 = vpack.c.b16 %v895, %v893
        %v986 = vpack.c.b16 %v898, %v896
        %v987 = vpack.c.b16 %v899, %v897
        %v988 = vpack.c.b16 %v902, %v900
        %v989 = vpack.c.b16 %v903, %v901
        %v990 = vpack.c.b16 %v906, %v904
        %v991 = vpack.c.b16 %v907, %v905
        %v992 = vpack.c.b16 %v910, %v908
        %v993 = vpack.c.b16 %v911, %v909
        %v994 = vpack.c.b16 %v914, %v912
        %v995 = vpack.c.b16 %v915, %v913
        %v996 = vpack.c.b16 %v918, %v916
        %v997 = vpack.c.b16 %v919, %v917
        %v998 = vpack.c.b16 %v922, %v920
        %v999 = vpack.c.b16 %v923, %v921
        %v1000 = vpack.c.b16 %v926, %v924
        %v1001 = vpack.c.b16 %v927, %v925
        %v1002 = vpack.c.b16 %v930, %v928
        %v1003 = vpack.c.b16 %v931, %v929
        %v1004 = vpack.c.b16 %v934, %v932
        %v1005 = vpack.c.b16 %v935, %v933
        %v1006 = vpack.c.b16 %v938, %v936
        %v1007 = vpack.c.b16 %v939, %v937
        %v1008 = vpack.c.b16 %v942, %v940
        %v1009 = vpack.c.b16 %v943, %v941
        %v1010 = vpack.c.b16 %v946, %v944
        %v1011 = vpack.c.b16 %v947, %v945
        %v1012 = vpack.c.b16 %v950, %v948
        %v1013 = vpack.c.b16 %v951, %v949
        %v1014 = vpack.c.b16 %v954, %v952
        %v1015 = vpack.c.b16 %v955, %v953
        %v1016 = vpack.c.b16 %v958, %v956
        %v1017 = vpack.c.b16 %v959, %v957
        %v1018 = vpack.c.b16 %v962, %v960
        %v1019 = vpack.c.b16 %v963, %v961
        %v1020 = vpack.c.b16 %v966, %v964
        %v1021 = vpack.c.b16 %v967, %v965
        %v1022 = vpack.c.b16 %v970, %v968
        %v1023 = vpack.c.b16 %v971, %v969
        %v1024 = vpack.c.b16 %v974, %v972
        %v1025 = vpack.c.b16 %v975, %v973
        %v1026 = vpack.c.b16 %v978, %v976
        %v1027 = vpack.c.b16 %v979, %v977
        %1076 = vmatprep.subr.bf16.mxu0 %v995
        %1077 = vmatpush1.bf16.msra.mxu0 %v994
        %1078 = vmatprep.subr.bf16.mxu0 %v993
        %1079 = vmatpush1.bf16.msra.mxu0 %v992
        %1080 = vmatprep.subr.bf16.mxu0 %v991
        %1081 = vmatpush1.bf16.msra.mxu0 %v990
        %1082 = vmatprep.subr.bf16.mxu0 %v989
        %1083 = vmatpush1.bf16.msra.mxu0 %v988
        %1084 = vmatprep.subr.bf16.mxu0 %v987
        %1085 = vmatpush1.bf16.msra.mxu0 %v986
        %1086 = vmatprep.subr.bf16.mxu0 %v985
        %1087 = vmatpush1.bf16.msra.mxu0 %v984
        %1088 = vmatprep.subr.bf16.mxu0 %v983
        %1089 = vmatpush1.bf16.msra.mxu0 %v982
        %1090 = vmatprep.subr.bf16.mxu0 %v981
        %1091 = vmatpush1.bf16.msra.mxu0 %v980
        %1092 = vmatprep.subr.bf16.mxu0 %v1011
        %1093 = vmatpush2.bf16.msra.mxu0 %v1010
        %1094 = vmatprep.subr.bf16.mxu0 %v1009
        %1095 = vmatpush2.bf16.msra.mxu0 %v1008
        %1096 = vmatprep.subr.bf16.mxu0 %v1007
        %1097 = vmatpush2.bf16.msra.mxu0 %v1006
        %1098 = vmatprep.subr.bf16.mxu0 %v1005
        %1099 = vmatpush2.bf16.msra.mxu0 %v1004
        %1100 = vmatprep.subr.bf16.mxu0 %v1003
        %1101 = vmatpush2.bf16.msra.mxu0 %v1002
        %1102 = vmatprep.subr.bf16.mxu0 %v1001
        %1103 = vmatpush2.bf16.msra.mxu0 %v1000
        %1104 = vmatprep.subr.bf16.mxu0 %v999
        %1105 = vmatpush2.bf16.msra.mxu0 %v998
        %1106 = vmatprep.subr.bf16.mxu0 %v997
        %1107 = vmatpush2.bf16.msra.mxu0 %v996
        %1108 = vmatprep.mubr.bf16.mxu0 %v831
        %1109 = vmatmul.mubr.bf16.gmra.mxu0 %v830
        %v1110 = vpop.f32.mrf.mxu0
        %v1111 = vadd.f32 %v813, %v1110
        %v1112 = vpop.f32.mrf.mxu0
        %v1113 = vadd.f32 %v817, %v1112
        %v1114 = vpop.f32.mrf.mxu0
        %v1115 = vadd.f32 %v813, %v1114
        %v1116 = vpop.f32.mrf.mxu0
        %v1117 = vadd.f32 %v817, %v1116
        %1118 = vdwg.mxu0
        %1119 = vmatprep.subr.bf16.mxu0 %v1027
        %1120 = vmatpush1.bf16.msra.mxu0 %v1026
        %1121 = vmatprep.subr.bf16.mxu0 %v1025
        %1122 = vmatpush1.bf16.msra.mxu0 %v1024
        %1123 = vmatprep.subr.bf16.mxu0 %v1023
        %1124 = vmatpush1.bf16.msra.mxu0 %v1022
        %1125 = vmatprep.subr.bf16.mxu0 %v1021
        %1126 = vmatpush1.bf16.msra.mxu0 %v1020
        %1127 = vmatprep.subr.bf16.mxu0 %v1019
        %1128 = vmatpush1.bf16.msra.mxu0 %v1018
        %1129 = vmatprep.subr.bf16.mxu0 %v1017
        %1130 = vmatpush1.bf16.msra.mxu0 %v1016
        %1131 = vmatprep.subr.bf16.mxu0 %v1015
        %1132 = vmatpush1.bf16.msra.mxu0 %v1014
        %1133 = vmatprep.subr.bf16.mxu0 %v1013
        %1134 = vmatpush1.bf16.msra.mxu0 %v1012
        %1135 = vmatprep.subr.bf16.mxu0 0
        %1136 = vmatpush2.bf16.msra.mxu0 0
        %1137 = vmatprep.subr.bf16.mxu0 0
        %1138 = vmatpush2.bf16.msra.mxu0 0
        %1139 = vmatprep.subr.bf16.mxu0 0
        %1140 = vmatpush2.bf16.msra.mxu0 0
        %1141 = vmatprep.subr.bf16.mxu0 0
        %1142 = vmatpush2.bf16.msra.mxu0 0
        %1143 = vmatprep.subr.bf16.mxu0 0
        %1144 = vmatpush2.bf16.msra.mxu0 0
        %1145 = vmatprep.subr.bf16.mxu0 0
        %1146 = vmatpush2.bf16.msra.mxu0 0
        %1147 = vmatprep.subr.bf16.mxu0 0
        %1148 = vmatpush2.bf16.msra.mxu0 0
        %1149 = vmatprep.subr.bf16.mxu0 0
        %1150 = vmatpush2.bf16.msra.mxu0 0
        %1151 = vmatprep.mubr.bf16.mxu0 0
        %1152 = vmatmul.mubr.bf16.gmra.mxu0 %v832
        %v1153 = vpop.f32.mrf.mxu0
        %v1154 = vadd.f32 %v1111, %v1153
        %v1155 = vpop.f32.mrf.mxu0
        %v1156 = vadd.f32 %v1113, %v1155
        %v1157 = vpop.f32.mrf.mxu0
        %v1158 = vadd.f32 %v1115, %v1157
        %v1159 = vpop.f32.mrf.mxu0
        %v1160 = vadd.f32 %v1117, %v1159
        %1161 = vdwg.mxu0
        %v1162 = vmax.f32 %v1154, 0.0
        %v1163 = vmax.f32 %v1156, 0.0
        %v1164 = vmax.f32 %v1158, 0.0
        %v1165 = vmax.f32 %v1160, 0.0
        %v1166 = vpack.c.bf16 %v1164, %v1162
        %v1167 = vpack.c.bf16 %v1165, %v1163
        %v1168 = vld [vmem:[%s606] sm:$0xf]
        %v1169 = vld [vmem:[%s606 + $0x4] sm:$0xf]
        %v1170 = vld [vmem:[%s606 + $0x8] sm:$0xf]
        %v1171 = vld [vmem:[%s606 + $0xc] sm:$0xf]
        %v1172 = vld [vmem:[%s606 + $0x10] sm:$0xf]
        %v1173 = vld [vmem:[%s606 + $0x14] sm:$0xf]
        %v1174 = vld [vmem:[%s606 + $0x18] sm:$0xf]
        %v1175 = vld [vmem:[%s606 + $0x1c] sm:$0xf]
        %v1176 = vld [vmem:[%s606 + $0x20] sm:$0xf]
        %v1177 = vld [vmem:[%s606 + $0x24] sm:$0xf]
        %v1178 = vld [vmem:[%s606 + $0x28] sm:$0xf]
        %v1179 = vld [vmem:[%s606 + $0x2c] sm:$0xf]
        %v1180 = vld [vmem:[%s606 + $0x30] sm:$0xf]
        %v1181 = vld [vmem:[%s606 + $0x34] sm:$0xf]
        %v1182 = vld [vmem:[%s606 + $0x38] sm:$0xf]
        %v1183 = vld [vmem:[%s606 + $0x3c] sm:$0xf]
        %v1184 = vld [vmem:[%s606 + $0x40] sm:$0xf]
        %v1185 = vld [vmem:[%s606 + $0x44] sm:$0xf]
        %v1186 = vld [vmem:[%s606 + $0x48] sm:$0xf]
        %v1187 = vld [vmem:[%s606 + $0x4c] sm:$0xf]
        %v1188 = vld [vmem:[%s606 + $0x50] sm:$0xf]
        %v1189 = vld [vmem:[%s606 + $0x54] sm:$0xf]
        %v1190 = vld [vmem:[%s606 + $0x58] sm:$0xf]
        %v1191 = vld [vmem:[%s606 + $0x5c] sm:$0xf]
        %v1192 = vld [vmem:[%s606 + $0x60] sm:$0xf]
        %v1193 = vld [vmem:[%s606 + $0x64] sm:$0xf]
        %v1194 = vld [vmem:[%s606 + $0x68] sm:$0xf]
        %v1195 = vld [vmem:[%s606 + $0x6c] sm:$0xf]
        %v1196 = vld [vmem:[%s606 + $0x70] sm:$0xf]
        %v1197 = vld [vmem:[%s606 + $0x74] sm:$0xf]
        %v1198 = vld [vmem:[%s606 + $0x78] sm:$0xf]
        %v1199 = vld [vmem:[%s606 + $0x7c] sm:$0xf]
        %v1200 = vld [vmem:[%s730] sm:$0x1]
        %v1202 = vlaneseq
        %v1203 = vshrl.u32 %v1202, 7
        %v1204 = vsub.s32 0, %v1203
        %v1205 = vrot.slane %v1200, %v1204
        %v1239 = vunpack.c.l.b16 %v1168
        %v1240 = vunpack.c.l.b16 %v1169
        %v1241 = vunpack.c.l.b16 %v1170
        %v1242 = vunpack.c.l.b16 %v1171
        %v1243 = vunpack.c.l.b16 %v1172
        %v1244 = vunpack.c.l.b16 %v1173
        %v1245 = vunpack.c.l.b16 %v1174
        %v1246 = vunpack.c.l.b16 %v1175
        %v1247 = vunpack.c.l.b16 %v1176
        %v1248 = vunpack.c.l.b16 %v1177
        %v1249 = vunpack.c.l.b16 %v1178
        %v1250 = vunpack.c.l.b16 %v1179
        %v1251 = vunpack.c.l.b16 %v1180
        %v1252 = vunpack.c.l.b16 %v1181
        %v1253 = vunpack.c.l.b16 %v1182
        %v1254 = vunpack.c.l.b16 %v1183
        %v1255 = vunpack.c.l.b16 %v1184
        %v1256 = vunpack.c.l.b16 %v1185
        %v1257 = vunpack.c.l.b16 %v1186
        %v1258 = vunpack.c.l.b16 %v1187
        %v1259 = vunpack.c.l.b16 %v1188
        %v1260 = vunpack.c.l.b16 %v1189
        %v1261 = vunpack.c.l.b16 %v1190
        %v1262 = vunpack.c.l.b16 %v1191
        %v1263 = vunpack.c.l.b16 %v1192
        %v1264 = vunpack.c.l.b16 %v1193
        %v1265 = vunpack.c.l.b16 %v1194
        %v1266 = vunpack.c.l.b16 %v1195
        %v1267 = vunpack.c.l.b16 %v1196
        %v1268 = vunpack.c.l.b16 %v1197
        %v1269 = vunpack.c.l.b16 %v1198
        %v1270 = vunpack.c.l.b16 %v1199
        %v1271 = vpack.c.b16 %v1240, %v1239
        %v1272 = vpack.c.b16 %v1242, %v1241
        %v1273 = vpack.c.b16 %v1244, %v1243
        %v1274 = vpack.c.b16 %v1246, %v1245
        %v1275 = vpack.c.b16 %v1248, %v1247
        %v1276 = vpack.c.b16 %v1250, %v1249
        %v1277 = vpack.c.b16 %v1252, %v1251
        %v1278 = vpack.c.b16 %v1254, %v1253
        %v1279 = vpack.c.b16 %v1256, %v1255
        %v1280 = vpack.c.b16 %v1258, %v1257
        %v1281 = vpack.c.b16 %v1260, %v1259
        %v1282 = vpack.c.b16 %v1262, %v1261
        %v1283 = vpack.c.b16 %v1264, %v1263
        %v1284 = vpack.c.b16 %v1266, %v1265
        %v1285 = vpack.c.b16 %v1268, %v1267
        %v1286 = vpack.c.b16 %v1270, %v1269
        %1303 = vmatprep.subr.bf16.mxu0 0
        %1304 = vmatpush1.bf16.msra.mxu0 %v1278
        %1305 = vmatprep.subr.bf16.mxu0 0
        %1306 = vmatpush1.bf16.msra.mxu0 %v1277
        %1307 = vmatprep.subr.bf16.mxu0 0
        %1308 = vmatpush1.bf16.msra.mxu0 %v1276
        %1309 = vmatprep.subr.bf16.mxu0 0
        %1310 = vmatpush1.bf16.msra.mxu0 %v1275
        %1311 = vmatprep.subr.bf16.mxu0 0
        %1312 = vmatpush1.bf16.msra.mxu0 %v1274
        %1313 = vmatprep.subr.bf16.mxu0 0
        %1314 = vmatpush1.bf16.msra.mxu0 %v1273
        %1315 = vmatprep.subr.bf16.mxu0 0
        %1316 = vmatpush1.bf16.msra.mxu0 %v1272
        %1317 = vmatprep.subr.bf16.mxu0 0
        %1318 = vmatpush1.bf16.msra.mxu0 %v1271
        %1319 = vmatprep.subr.bf16.mxu0 0
        %1320 = vmatpush2.bf16.msra.mxu0 %v1286
        %1321 = vmatprep.subr.bf16.mxu0 0
        %1322 = vmatpush2.bf16.msra.mxu0 %v1285
        %1323 = vmatprep.subr.bf16.mxu0 0
        %1324 = vmatpush2.bf16.msra.mxu0 %v1284
        %1325 = vmatprep.subr.bf16.mxu0 0
        %1326 = vmatpush2.bf16.msra.mxu0 %v1283
        %1327 = vmatprep.subr.bf16.mxu0 0
        %1328 = vmatpush2.bf16.msra.mxu0 %v1282
        %1329 = vmatprep.subr.bf16.mxu0 0
        %1330 = vmatpush2.bf16.msra.mxu0 %v1281
        %1331 = vmatprep.subr.bf16.mxu0 0
        %1332 = vmatpush2.bf16.msra.mxu0 %v1280
        %1333 = vmatprep.subr.bf16.mxu0 0
        %1334 = vmatpush2.bf16.msra.mxu0 %v1279
        %1335 = vmatprep.mubr.bf16.mxu0 %v1167
        %1336 = vmatmul.mubr.bf16.gmra.mxu0 %v1166
        %v1337 = vpop.f32.mrf.mxu0
        %v1338 = vadd.f32 %v1205, %v1337
        %v1339 = vpop.f32.mrf.mxu0
        %v1340 = vpop.f32.mrf.mxu0
        %v1341 = vadd.f32 %v1205, %v1340
        %v1342 = vpop.f32.mrf.mxu0
        %1343 = vdwg.mxu0
        %v1344 = vmax.f32 %v1338, 0.0
        %v1345 = vmax.f32 %v1341, 0.0
        %v1346 = vpack.c.bf16 %v1345, %v1344
        %v1347 = vld [vmem:[%s735] sm:$0xf]
        %v1348 = vld [vmem:[%s735 + $0x4] sm:$0xf]
        %v1349 = vld [vmem:[%s735 + $0x8] sm:$0xf]
        %v1350 = vld [vmem:[%s735 + $0xc] sm:$0xf]
        %v1351 = vld [vmem:[%s735 + $0x10] sm:$0xf]
        %v1352 = vld [vmem:[%s735 + $0x14] sm:$0xf]
        %v1353 = vld [vmem:[%s735 + $0x18] sm:$0xf]
        %v1354 = vld [vmem:[%s735 + $0x1c] sm:$0xf]
        %v1355 = vld [vmem:[%s735 + $0x20] sm:$0xf]
        %v1356 = vld [vmem:[%s735 + $0x24] sm:$0xf]
        %v1357 = vld [vmem:[%s735 + $0x28] sm:$0xf]
        %v1358 = vld [vmem:[%s735 + $0x2c] sm:$0xf]
        %v1359 = vld [vmem:[%s735 + $0x30] sm:$0xf]
        %v1360 = vld [vmem:[%s735 + $0x34] sm:$0xf]
        %v1361 = vld [vmem:[%s735 + $0x38] sm:$0xf]
        %v1362 = vld [vmem:[%s735 + $0x3c] sm:$0xf]
        %v1363 = vld [vmem:[%s738] sm:$0x1]
        %v1365 = vlaneseq
        %v1366 = vshrl.u32 %v1365, 7
        %v1367 = vsub.s32 0, %v1366
        %v1368 = vrot.slane %v1363, %v1367
        %v1386 = vunpack.c.l.b16 %v1347
        %v1387 = vunpack.c.l.b16 %v1348
        %v1388 = vunpack.c.l.b16 %v1349
        %v1389 = vunpack.c.l.b16 %v1350
        %v1390 = vunpack.c.l.b16 %v1351
        %v1391 = vunpack.c.l.b16 %v1352
        %v1392 = vunpack.c.l.b16 %v1353
        %v1393 = vunpack.c.l.b16 %v1354
        %v1394 = vunpack.c.l.b16 %v1355
        %v1395 = vunpack.c.l.b16 %v1356
        %v1396 = vunpack.c.l.b16 %v1357
        %v1397 = vunpack.c.l.b16 %v1358
        %v1398 = vunpack.c.l.b16 %v1359
        %v1399 = vunpack.c.l.b16 %v1360
        %v1400 = vunpack.c.l.b16 %v1361
        %v1401 = vunpack.c.l.b16 %v1362
        %v1402 = vpack.c.b16 %v1387, %v1386
        %v1403 = vpack.c.b16 %v1389, %v1388
        %v1404 = vpack.c.b16 %v1391, %v1390
        %v1405 = vpack.c.b16 %v1393, %v1392
        %v1406 = vpack.c.b16 %v1395, %v1394
        %v1407 = vpack.c.b16 %v1397, %v1396
        %v1408 = vpack.c.b16 %v1399, %v1398
        %v1409 = vpack.c.b16 %v1401, %v1400
        %1418 = vmatprep.subr.bf16.mxu0 0
        %1419 = vmatpush1.bf16.msra.mxu0 %v1409
        %1420 = vmatprep.subr.bf16.mxu0 0
        %1421 = vmatpush1.bf16.msra.mxu0 %v1408
        %1422 = vmatprep.subr.bf16.mxu0 0
        %1423 = vmatpush1.bf16.msra.mxu0 %v1407
        %1424 = vmatprep.subr.bf16.mxu0 0
        %1425 = vmatpush1.bf16.msra.mxu0 %v1406
        %1426 = vmatprep.subr.bf16.mxu0 0
        %1427 = vmatpush1.bf16.msra.mxu0 %v1405
        %1428 = vmatprep.subr.bf16.mxu0 0
        %1429 = vmatpush1.bf16.msra.mxu0 %v1404
        %1430 = vmatprep.subr.bf16.mxu0 0
        %1431 = vmatpush1.bf16.msra.mxu0 %v1403
        %1432 = vmatprep.subr.bf16.mxu0 0
        %1433 = vmatpush1.bf16.msra.mxu0 %v1402
        %1434 = vmatprep.subr.bf16.mxu0 0
        %1435 = vmatpush2.bf16.msra.mxu0 0
        %1436 = vmatprep.subr.bf16.mxu0 0
        %1437 = vmatpush2.bf16.msra.mxu0 0
        %1438 = vmatprep.subr.bf16.mxu0 0
        %1439 = vmatpush2.bf16.msra.mxu0 0
        %1440 = vmatprep.subr.bf16.mxu0 0
        %1441 = vmatpush2.bf16.msra.mxu0 0
        %1442 = vmatprep.subr.bf16.mxu0 0
        %1443 = vmatpush2.bf16.msra.mxu0 0
        %1444 = vmatprep.subr.bf16.mxu0 0
        %1445 = vmatpush2.bf16.msra.mxu0 0
        %1446 = vmatprep.subr.bf16.mxu0 0
        %1447 = vmatpush2.bf16.msra.mxu0 0
        %1448 = vmatprep.subr.bf16.mxu0 0
        %1449 = vmatpush2.bf16.msra.mxu0 0
        %1450 = vmatprep.mubr.bf16.mxu0 0
        %1451 = vmatmul.mubr.bf16.gmra.mxu0 %v1346
        %v1452 = vpop.f32.mrf.mxu0
        %v1453 = vadd.f32 %v1368, %v1452
        %v1454 = vpop.f32.mrf.mxu0
        %v1455 = vpop.f32.mrf.mxu0
        %v1456 = vadd.f32 %v1368, %v1455
        %v1457 = vpop.f32.mrf.mxu0
        %1458 = vdwg.mxu0
        %v1459 = vmax.f32 %v1453, 0.0
        %v1460 = vmax.f32 %v1456, 0.0
        %v1461 = vld [vmem:[%s0] sm:$0xf]
        %v1462 = vld [vmem:[%s0 + $0x4] sm:$0xf]
        %v1463 = vpack.c.bf16 %v1460, %v1459
        %v1466 = vunpack.c.l.b16 %v1461
        %v1467 = vunpack.c.l.b16 %v1462
        %v1468 = vpack.c.b16 %v1467, %v1466
        %v1470 = vld [vmem:[%s615] sm:$0xff]
        %v1471 = vld [vmem:[%s615 + $0x8] sm:$0xff]
        %v1472 = vld [vmem:[%s615 + $0x10] sm:$0xff]
        %v1473 = vld [vmem:[%s615 + $0x18] sm:$0xff]
        %v1474 = vld [vmem:[%s615 + $0x20] sm:$0xff]
        %v1475 = vld [vmem:[%s615 + $0x28] sm:$0xff]
        %v1476 = vld [vmem:[%s615 + $0x30] sm:$0xff]
        %v1477 = vld [vmem:[%s615 + $0x38] sm:$0xff]
        %v1478 = vld [vmem:[%s615 + $0x40] sm:$0xff]
        %v1479 = vld [vmem:[%s615 + $0x48] sm:$0xff]
        %v1480 = vld [vmem:[%s615 + $0x50] sm:$0xff]
        %v1481 = vld [vmem:[%s615 + $0x58] sm:$0xff]
        %v1482 = vld [vmem:[%s615 + $0x60] sm:$0xff]
        %v1483 = vld [vmem:[%s615 + $0x68] sm:$0xff]
        %v1484 = vld [vmem:[%s615 + $0x70] sm:$0xff]
        %v1485 = vld [vmem:[%s615 + $0x78] sm:$0xff]
        %v1486 = vld [vmem:[%s615 + $0x80] sm:$0xff]
        %v1487 = vld [vmem:[%s615 + $0x88] sm:$0xff]
        %v1488 = vld [vmem:[%s615 + $0x90] sm:$0xff]
        %v1489 = vld [vmem:[%s615 + $0x98] sm:$0xff]
        %v1490 = vld [vmem:[%s615 + $0xa0] sm:$0xff]
        %v1491 = vld [vmem:[%s615 + $0xa8] sm:$0xff]
        %v1492 = vld [vmem:[%s615 + $0xb0] sm:$0xff]
        %v1493 = vld [vmem:[%s615 + $0xb8] sm:$0xff]
        %v1494 = vld [vmem:[%s615 + $0xc0] sm:$0xff]
        %v1495 = vld [vmem:[%s615 + $0xc8] sm:$0xff]
        %v1496 = vld [vmem:[%s615 + $0xd0] sm:$0xff]
        %v1497 = vld [vmem:[%s615 + $0xd8] sm:$0xff]
        %v1498 = vld [vmem:[%s615 + $0xe0] sm:$0xff]
        %v1499 = vld [vmem:[%s615 + $0xe8] sm:$0xff]
        %v1500 = vld [vmem:[%s615 + $0xf0] sm:$0xff]
        %v1501 = vld [vmem:[%s615 + $0xf8] sm:$0xff]
        %v1502 = vld [vmem:[%s615 + $0x100] sm:$0xff]
        %v1503 = vld [vmem:[%s615 + $0x108] sm:$0xff]
        %v1504 = vld [vmem:[%s615 + $0x110] sm:$0xff]
        %v1505 = vld [vmem:[%s615 + $0x118] sm:$0xff]
        %v1506 = vld [vmem:[%s615 + $0x120] sm:$0xff]
        %v1507 = vld [vmem:[%s615 + $0x128] sm:$0xff]
        %v1508 = vld [vmem:[%s615 + $0x130] sm:$0xff]
        %v1509 = vld [vmem:[%s615 + $0x138] sm:$0xff]
        %v1510 = vld [vmem:[%s615 + $0x140] sm:$0xff]
        %v1511 = vld [vmem:[%s615 + $0x148] sm:$0xff]
        %v1512 = vld [vmem:[%s615 + $0x150] sm:$0xff]
        %v1513 = vld [vmem:[%s615 + $0x158] sm:$0xff]
        %v1514 = vld [vmem:[%s615 + $0x160] sm:$0xff]
        %v1515 = vld [vmem:[%s615 + $0x168] sm:$0xff]
        %v1516 = vld [vmem:[%s615 + $0x170] sm:$0xff]
        %v1517 = vld [vmem:[%s615 + $0x178] sm:$0xff]
        %v1518 = vld [vmem:[%s615 + $0x180] sm:$0xff]
        %v1519 = vld [vmem:[%s615 + $0x188] sm:$0xff]
        %v1520 = vld [vmem:[%s615 + $0x190] sm:$0xff]
        %v1521 = vld [vmem:[%s615 + $0x198] sm:$0xff]
        %v1522 = vld [vmem:[%s615 + $0x1a0] sm:$0xff]
        %v1523 = vld [vmem:[%s615 + $0x1a8] sm:$0xff]
        %v1524 = vld [vmem:[%s615 + $0x1b0] sm:$0xff]
        %v1525 = vld [vmem:[%s615 + $0x1b8] sm:$0xff]
        %v1526 = vld [vmem:[%s615 + $0x1c0] sm:$0xff]
        %v1527 = vld [vmem:[%s615 + $0x1c8] sm:$0xff]
        %v1528 = vld [vmem:[%s615 + $0x1d0] sm:$0xff]
        %v1529 = vld [vmem:[%s615 + $0x1d8] sm:$0xff]
        %v1530 = vld [vmem:[%s615 + $0x1e0] sm:$0xff]
        %v1531 = vld [vmem:[%s615 + $0x1e8] sm:$0xff]
        %v1532 = vld [vmem:[%s615 + $0x1f0] sm:$0xff]
        %v1533 = vld [vmem:[%s615 + $0x1f8] sm:$0xff]
        %v1534 = vld [vmem:[%s742] sm:$0xf]
        %v1536 = vlaneseq
        %v1537 = vshrl.u32 %v1536, 7
        %v1538 = vsub.s32 0, %v1537
        %v1539 = vrot.slane %v1534, %v1538
        %v1540 = vlaneseq
        %v1541 = vshrl.u32 %v1540, 7
        %v1542 = vsub.s32 1, %v1541
        %v1543 = vrot.slane %v1534, %v1542
        %v1544 = vlaneseq
        %v1545 = vshrl.u32 %v1544, 7
        %v1546 = vsub.s32 2, %v1545
        %v1547 = vrot.slane %v1534, %v1546
        %v1548 = vlaneseq
        %v1549 = vshrl.u32 %v1548, 7
        %v1550 = vsub.s32 3, %v1549
        %v1551 = vrot.slane %v1534, %v1550
        %v1620 = vunpack.c.l.b16 %v1470
        %v1621 = vunpack.c.h.b16 %v1470
        %v1622 = vunpack.c.l.b16 %v1471
        %v1623 = vunpack.c.h.b16 %v1471
        %v1624 = vunpack.c.l.b16 %v1472
        %v1625 = vunpack.c.h.b16 %v1472
        %v1626 = vunpack.c.l.b16 %v1473
        %v1627 = vunpack.c.h.b16 %v1473
        %v1628 = vunpack.c.l.b16 %v1474
        %v1629 = vunpack.c.h.b16 %v1474
        %v1630 = vunpack.c.l.b16 %v1475
        %v1631 = vunpack.c.h.b16 %v1475
        %v1632 = vunpack.c.l.b16 %v1476
        %v1633 = vunpack.c.h.b16 %v1476
        %v1634 = vunpack.c.l.b16 %v1477
        %v1635 = vunpack.c.h.b16 %v1477
        %v1636 = vunpack.c.l.b16 %v1478
        %v1637 = vunpack.c.h.b16 %v1478
        %v1638 = vunpack.c.l.b16 %v1479
        %v1639 = vunpack.c.h.b16 %v1479
        %v1640 = vunpack.c.l.b16 %v1480
        %v1641 = vunpack.c.h.b16 %v1480
        %v1642 = vunpack.c.l.b16 %v1481
        %v1643 = vunpack.c.h.b16 %v1481
        %v1644 = vunpack.c.l.b16 %v1482
        %v1645 = vunpack.c.h.b16 %v1482
        %v1646 = vunpack.c.l.b16 %v1483
        %v1647 = vunpack.c.h.b16 %v1483
        %v1648 = vunpack.c.l.b16 %v1484
        %v1649 = vunpack.c.h.b16 %v1484
        %v1650 = vunpack.c.l.b16 %v1485
        %v1651 = vunpack.c.h.b16 %v1485
        %v1652 = vunpack.c.l.b16 %v1486
        %v1653 = vunpack.c.h.b16 %v1486
        %v1654 = vunpack.c.l.b16 %v1487
        %v1655 = vunpack.c.h.b16 %v1487
        %v1656 = vunpack.c.l.b16 %v1488
        %v1657 = vunpack.c.h.b16 %v1488
        %v1658 = vunpack.c.l.b16 %v1489
        %v1659 = vunpack.c.h.b16 %v1489
        %v1660 = vunpack.c.l.b16 %v1490
        %v1661 = vunpack.c.h.b16 %v1490
        %v1662 = vunpack.c.l.b16 %v1491
        %v1663 = vunpack.c.h.b16 %v1491
        %v1664 = vunpack.c.l.b16 %v1492
        %v1665 = vunpack.c.h.b16 %v1492
        %v1666 = vunpack.c.l.b16 %v1493
        %v1667 = vunpack.c.h.b16 %v1493
        %v1668 = vunpack.c.l.b16 %v1494
        %v1669 = vunpack.c.h.b16 %v1494
        %v1670 = vunpack.c.l.b16 %v1495
        %v1671 = vunpack.c.h.b16 %v1495
        %v1672 = vunpack.c.l.b16 %v1496
        %v1673 = vunpack.c.h.b16 %v1496
        %v1674 = vunpack.c.l.b16 %v1497
        %v1675 = vunpack.c.h.b16 %v1497
        %v1676 = vunpack.c.l.b16 %v1498
        %v1677 = vunpack.c.h.b16 %v1498
        %v1678 = vunpack.c.l.b16 %v1499
        %v1679 = vunpack.c.h.b16 %v1499
        %v1680 = vunpack.c.l.b16 %v1500
        %v1681 = vunpack.c.h.b16 %v1500
        %v1682 = vunpack.c.l.b16 %v1501
        %v1683 = vunpack.c.h.b16 %v1501
        %v1684 = vunpack.c.l.b16 %v1502
        %v1685 = vunpack.c.h.b16 %v1502
        %v1686 = vunpack.c.l.b16 %v1503
        %v1687 = vunpack.c.h.b16 %v1503
        %v1688 = vunpack.c.l.b16 %v1504
        %v1689 = vunpack.c.h.b16 %v1504
        %v1690 = vunpack.c.l.b16 %v1505
        %v1691 = vunpack.c.h.b16 %v1505
        %v1692 = vunpack.c.l.b16 %v1506
        %v1693 = vunpack.c.h.b16 %v1506
        %v1694 = vunpack.c.l.b16 %v1507
        %v1695 = vunpack.c.h.b16 %v1507
        %v1696 = vunpack.c.l.b16 %v1508
        %v1697 = vunpack.c.h.b16 %v1508
        %v1698 = vunpack.c.l.b16 %v1509
        %v1699 = vunpack.c.h.b16 %v1509
        %v1700 = vunpack.c.l.b16 %v1510
        %v1701 = vunpack.c.h.b16 %v1510
        %v1702 = vunpack.c.l.b16 %v1511
        %v1703 = vunpack.c.h.b16 %v1511
        %v1704 = vunpack.c.l.b16 %v1512
        %v1705 = vunpack.c.h.b16 %v1512
        %v1706 = vunpack.c.l.b16 %v1513
        %v1707 = vunpack.c.h.b16 %v1513
        %v1708 = vunpack.c.l.b16 %v1514
        %v1709 = vunpack.c.h.b16 %v1514
        %v1710 = vunpack.c.l.b16 %v1515
        %v1711 = vunpack.c.h.b16 %v1515
        %v1712 = vunpack.c.l.b16 %v1516
        %v1713 = vunpack.c.h.b16 %v1516
        %v1714 = vunpack.c.l.b16 %v1517
        %v1715 = vunpack.c.h.b16 %v1517
        %v1716 = vunpack.c.l.b16 %v1518
        %v1717 = vunpack.c.h.b16 %v1518
        %v1718 = vunpack.c.l.b16 %v1519
        %v1719 = vunpack.c.h.b16 %v1519
        %v1720 = vunpack.c.l.b16 %v1520
        %v1721 = vunpack.c.h.b16 %v1520
        %v1722 = vunpack.c.l.b16 %v1521
        %v1723 = vunpack.c.h.b16 %v1521
        %v1724 = vunpack.c.l.b16 %v1522
        %v1725 = vunpack.c.h.b16 %v1522
        %v1726 = vunpack.c.l.b16 %v1523
        %v1727 = vunpack.c.h.b16 %v1523
        %v1728 = vunpack.c.l.b16 %v1524
        %v1729 = vunpack.c.h.b16 %v1524
        %v1730 = vunpack.c.l.b16 %v1525
        %v1731 = vunpack.c.h.b16 %v1525
        %v1732 = vunpack.c.l.b16 %v1526
        %v1733 = vunpack.c.h.b16 %v1526
        %v1734 = vunpack.c.l.b16 %v1527
        %v1735 = vunpack.c.h.b16 %v1527
        %v1736 = vunpack.c.l.b16 %v1528
        %v1737 = vunpack.c.h.b16 %v1528
        %v1738 = vunpack.c.l.b16 %v1529
        %v1739 = vunpack.c.h.b16 %v1529
        %v1740 = vunpack.c.l.b16 %v1530
        %v1741 = vunpack.c.h.b16 %v1530
        %v1742 = vunpack.c.l.b16 %v1531
        %v1743 = vunpack.c.h.b16 %v1531
        %v1744 = vunpack.c.l.b16 %v1532
        %v1745 = vunpack.c.h.b16 %v1532
        %v1746 = vunpack.c.l.b16 %v1533
        %v1747 = vunpack.c.h.b16 %v1533
        %v1748 = vpack.c.b16 %v1624, %v1620
        %v1749 = vpack.c.b16 %v1625, %v1621
        %v1750 = vpack.c.b16 %v1626, %v1622
        %v1751 = vpack.c.b16 %v1627, %v1623
        %v1752 = vpack.c.b16 %v1632, %v1628
        %v1753 = vpack.c.b16 %v1633, %v1629
        %v1754 = vpack.c.b16 %v1634, %v1630
        %v1755 = vpack.c.b16 %v1635, %v1631
        %v1756 = vpack.c.b16 %v1640, %v1636
        %v1757 = vpack.c.b16 %v1641, %v1637
        %v1758 = vpack.c.b16 %v1642, %v1638
        %v1759 = vpack.c.b16 %v1643, %v1639
        %v1760 = vpack.c.b16 %v1648, %v1644
        %v1761 = vpack.c.b16 %v1649, %v1645
        %v1762 = vpack.c.b16 %v1650, %v1646
        %v1763 = vpack.c.b16 %v1651, %v1647
        %v1764 = vpack.c.b16 %v1656, %v1652
        %v1765 = vpack.c.b16 %v1657, %v1653
        %v1766 = vpack.c.b16 %v1658, %v1654
        %v1767 = vpack.c.b16 %v1659, %v1655
        %v1768 = vpack.c.b16 %v1664, %v1660
        %v1769 = vpack.c.b16 %v1665, %v1661
        %v1770 = vpack.c.b16 %v1666, %v1662
        %v1771 = vpack.c.b16 %v1667, %v1663
        %v1772 = vpack.c.b16 %v1672, %v1668
        %v1773 = vpack.c.b16 %v1673, %v1669
        %v1774 = vpack.c.b16 %v1674, %v1670
        %v1775 = vpack.c.b16 %v1675, %v1671
        %v1776 = vpack.c.b16 %v1680, %v1676
        %v1777 = vpack.c.b16 %v1681, %v1677
        %v1778 = vpack.c.b16 %v1682, %v1678
        %v1779 = vpack.c.b16 %v1683, %v1679
        %v1780 = vpack.c.b16 %v1688, %v1684
        %v1781 = vpack.c.b16 %v1689, %v1685
        %v1782 = vpack.c.b16 %v1690, %v1686
        %v1783 = vpack.c.b16 %v1691, %v1687
        %v1784 = vpack.c.b16 %v1696, %v1692
        %v1785 = vpack.c.b16 %v1697, %v1693
        %v1786 = vpack.c.b16 %v1698, %v1694
        %v1787 = vpack.c.b16 %v1699, %v1695
        %v1788 = vpack.c.b16 %v1704, %v1700
        %v1789 = vpack.c.b16 %v1705, %v1701
        %v1790 = vpack.c.b16 %v1706, %v1702
        %v1791 = vpack.c.b16 %v1707, %v1703
        %v1792 = vpack.c.b16 %v1712, %v1708
        %v1793 = vpack.c.b16 %v1713, %v1709
        %v1794 = vpack.c.b16 %v1714, %v1710
        %v1795 = vpack.c.b16 %v1715, %v1711
        %v1796 = vpack.c.b16 %v1720, %v1716
        %v1797 = vpack.c.b16 %v1721, %v1717
        %v1798 = vpack.c.b16 %v1722, %v1718
        %v1799 = vpack.c.b16 %v1723, %v1719
        %v1800 = vpack.c.b16 %v1728, %v1724
        %v1801 = vpack.c.b16 %v1729, %v1725
        %v1802 = vpack.c.b16 %v1730, %v1726
        %v1803 = vpack.c.b16 %v1731, %v1727
        %v1804 = vpack.c.b16 %v1736, %v1732
        %v1805 = vpack.c.b16 %v1737, %v1733
        %v1806 = vpack.c.b16 %v1738, %v1734
        %v1807 = vpack.c.b16 %v1739, %v1735
        %v1808 = vpack.c.b16 %v1744, %v1740
        %v1809 = vpack.c.b16 %v1745, %v1741
        %v1810 = vpack.c.b16 %v1746, %v1742
        %v1811 = vpack.c.b16 %v1747, %v1743
        %1876 = vmatprep.subr.bf16.mxu0 %v1777
        %1877 = vmatpush1.bf16.msra.mxu0 %v1776
        %1878 = vmatprep.subr.bf16.mxu0 %v1773
        %1879 = vmatpush1.bf16.msra.mxu0 %v1772
        %1880 = vmatprep.subr.bf16.mxu0 %v1769
        %1881 = vmatpush1.bf16.msra.mxu0 %v1768
        %1882 = vmatprep.subr.bf16.mxu0 %v1765
        %1883 = vmatpush1.bf16.msra.mxu0 %v1764
        %1884 = vmatprep.subr.bf16.mxu0 %v1761
        %1885 = vmatpush1.bf16.msra.mxu0 %v1760
        %1886 = vmatprep.subr.bf16.mxu0 %v1757
        %1887 = vmatpush1.bf16.msra.mxu0 %v1756
        %1888 = vmatprep.subr.bf16.mxu0 %v1753
        %1889 = vmatpush1.bf16.msra.mxu0 %v1752
        %1890 = vmatprep.subr.bf16.mxu0 %v1749
        %1891 = vmatpush1.bf16.msra.mxu0 %v1748
        %1892 = vmatprep.subr.bf16.mxu0 %v1809
        %1893 = vmatpush2.bf16.msra.mxu0 %v1808
        %1894 = vmatprep.subr.bf16.mxu0 %v1805
        %1895 = vmatpush2.bf16.msra.mxu0 %v1804
        %1896 = vmatprep.subr.bf16.mxu0 %v1801
        %1897 = vmatpush2.bf16.msra.mxu0 %v1800
        %1898 = vmatprep.subr.bf16.mxu0 %v1797
        %1899 = vmatpush2.bf16.msra.mxu0 %v1796
        %1900 = vmatprep.subr.bf16.mxu0 %v1793
        %1901 = vmatpush2.bf16.msra.mxu0 %v1792
        %1902 = vmatprep.subr.bf16.mxu0 %v1789
        %1903 = vmatpush2.bf16.msra.mxu0 %v1788
        %1904 = vmatprep.subr.bf16.mxu0 %v1785
        %1905 = vmatpush2.bf16.msra.mxu0 %v1784
        %1906 = vmatprep.subr.bf16.mxu0 %v1781
        %1907 = vmatpush2.bf16.msra.mxu0 %v1780
        %1908 = vmatprep.mubr.bf16.mxu0 %v1463
        %1909 = vmatmul.mubr.bf16.gmra.mxu0 %v1468
        %v1910 = vpop.f32.mrf.mxu0
        %v1911 = vadd.f32 %v1539, %v1910
        %v1912 = vpop.f32.mrf.mxu0
        %v1913 = vadd.f32 %v1543, %v1912
        %v1914 = vpop.f32.mrf.mxu0
        %v1915 = vadd.f32 %v1539, %v1914
        %v1916 = vpop.f32.mrf.mxu0
        %v1917 = vadd.f32 %v1543, %v1916
        %1918 = vdwg.mxu0
        %1919 = vmatprep.subr.bf16.mxu0 %v1779
        %1920 = vmatpush1.bf16.msra.mxu0 %v1778
        %1921 = vmatprep.subr.bf16.mxu0 %v1775
        %1922 = vmatpush1.bf16.msra.mxu0 %v1774
        %1923 = vmatprep.subr.bf16.mxu0 %v1771
        %1924 = vmatpush1.bf16.msra.mxu0 %v1770
        %1925 = vmatprep.subr.bf16.mxu0 %v1767
        %1926 = vmatpush1.bf16.msra.mxu0 %v1766
        %1927 = vmatprep.subr.bf16.mxu0 %v1763
        %1928 = vmatpush1.bf16.msra.mxu0 %v1762
        %1929 = vmatprep.subr.bf16.mxu0 %v1759
        %1930 = vmatpush1.bf16.msra.mxu0 %v1758
        %1931 = vmatprep.subr.bf16.mxu0 %v1755
        %1932 = vmatpush1.bf16.msra.mxu0 %v1754
        %1933 = vmatprep.subr.bf16.mxu0 %v1751
        %1934 = vmatpush1.bf16.msra.mxu0 %v1750
        %1935 = vmatprep.subr.bf16.mxu0 %v1811
        %1936 = vmatpush2.bf16.msra.mxu0 %v1810
        %1937 = vmatprep.subr.bf16.mxu0 %v1807
        %1938 = vmatpush2.bf16.msra.mxu0 %v1806
        %1939 = vmatprep.subr.bf16.mxu0 %v1803
        %1940 = vmatpush2.bf16.msra.mxu0 %v1802
        %1941 = vmatprep.subr.bf16.mxu0 %v1799
        %1942 = vmatpush2.bf16.msra.mxu0 %v1798
        %1943 = vmatprep.subr.bf16.mxu0 %v1795
        %1944 = vmatpush2.bf16.msra.mxu0 %v1794
        %1945 = vmatprep.subr.bf16.mxu0 %v1791
        %1946 = vmatpush2.bf16.msra.mxu0 %v1790
        %1947 = vmatprep.subr.bf16.mxu0 %v1787
        %1948 = vmatpush2.bf16.msra.mxu0 %v1786
        %1949 = vmatprep.subr.bf16.mxu0 %v1783
        %1950 = vmatpush2.bf16.msra.mxu0 %v1782
        %1951 = vmatprep.mubr.bf16.mxu0 %v1463
        %1952 = vmatmul.mubr.bf16.gmra.mxu0 %v1468
        %v1953 = vpop.f32.mrf.mxu0
        %v1954 = vadd.f32 %v1547, %v1953
        %v1955 = vpop.f32.mrf.mxu0
        %v1956 = vadd.f32 %v1551, %v1955
        %v1957 = vpop.f32.mrf.mxu0
        %v1958 = vadd.f32 %v1547, %v1957
        %v1959 = vpop.f32.mrf.mxu0
        %v1960 = vadd.f32 %v1551, %v1959
        %1961 = vdwg.mxu0
        %v1962 = vmax.f32 %v1911, 0.0
        %v1963 = vmax.f32 %v1913, 0.0
        %v1964 = vmax.f32 %v1954, 0.0
        %v1965 = vmax.f32 %v1956, 0.0
        %v1966 = vmax.f32 %v1915, 0.0
        %v1967 = vmax.f32 %v1917, 0.0
        %v1968 = vmax.f32 %v1958, 0.0
        %v1969 = vmax.f32 %v1960, 0.0
        %v1970 = vpack.c.bf16 %v1966, %v1962
        %v1971 = vpack.c.bf16 %v1967, %v1963
        %v1972 = vpack.c.bf16 %v1968, %v1964
        %v1973 = vpack.c.bf16 %v1969, %v1965
        %v1974 = vld [vmem:[%s624] sm:$0xff]
        %v1975 = vld [vmem:[%s624 + $0x8] sm:$0xff]
        %v1976 = vld [vmem:[%s624 + $0x10] sm:$0xff]
        %v1977 = vld [vmem:[%s624 + $0x18] sm:$0xff]
        %v1978 = vld [vmem:[%s624 + $0x20] sm:$0xff]
        %v1979 = vld [vmem:[%s624 + $0x28] sm:$0xff]
        %v1980 = vld [vmem:[%s624 + $0x30] sm:$0xff]
        %v1981 = vld [vmem:[%s624 + $0x38] sm:$0xff]
        %v1982 = vld [vmem:[%s624 + $0x40] sm:$0xff]
        %v1983 = vld [vmem:[%s624 + $0x48] sm:$0xff]
        %v1984 = vld [vmem:[%s624 + $0x50] sm:$0xff]
        %v1985 = vld [vmem:[%s624 + $0x58] sm:$0xff]
        %v1986 = vld [vmem:[%s624 + $0x60] sm:$0xff]
        %v1987 = vld [vmem:[%s624 + $0x68] sm:$0xff]
        %v1988 = vld [vmem:[%s624 + $0x70] sm:$0xff]
        %v1989 = vld [vmem:[%s624 + $0x78] sm:$0xff]
        %v1990 = vld [vmem:[%s624 + $0x80] sm:$0xff]
        %v1991 = vld [vmem:[%s624 + $0x88] sm:$0xff]
        %v1992 = vld [vmem:[%s624 + $0x90] sm:$0xff]
        %v1993 = vld [vmem:[%s624 + $0x98] sm:$0xff]
        %v1994 = vld [vmem:[%s624 + $0xa0] sm:$0xff]
        %v1995 = vld [vmem:[%s624 + $0xa8] sm:$0xff]
        %v1996 = vld [vmem:[%s624 + $0xb0] sm:$0xff]
        %v1997 = vld [vmem:[%s624 + $0xb8] sm:$0xff]
        %v1998 = vld [vmem:[%s624 + $0xc0] sm:$0xff]
        %v1999 = vld [vmem:[%s624 + $0xc8] sm:$0xff]
        %v2000 = vld [vmem:[%s624 + $0xd0] sm:$0xff]
        %v2001 = vld [vmem:[%s624 + $0xd8] sm:$0xff]
        %v2002 = vld [vmem:[%s624 + $0xe0] sm:$0xff]
        %v2003 = vld [vmem:[%s624 + $0xe8] sm:$0xff]
        %v2004 = vld [vmem:[%s624 + $0xf0] sm:$0xff]
        %v2005 = vld [vmem:[%s624 + $0xf8] sm:$0xff]
        %v2006 = vld [vmem:[%s624 + $0x100] sm:$0xff]
        %v2007 = vld [vmem:[%s624 + $0x108] sm:$0xff]
        %v2008 = vld [vmem:[%s624 + $0x110] sm:$0xff]
        %v2009 = vld [vmem:[%s624 + $0x118] sm:$0xff]
        %v2010 = vld [vmem:[%s624 + $0x120] sm:$0xff]
        %v2011 = vld [vmem:[%s624 + $0x128] sm:$0xff]
        %v2012 = vld [vmem:[%s624 + $0x130] sm:$0xff]
        %v2013 = vld [vmem:[%s624 + $0x138] sm:$0xff]
        %v2014 = vld [vmem:[%s624 + $0x140] sm:$0xff]
        %v2015 = vld [vmem:[%s624 + $0x148] sm:$0xff]
        %v2016 = vld [vmem:[%s624 + $0x150] sm:$0xff]
        %v2017 = vld [vmem:[%s624 + $0x158] sm:$0xff]
        %v2018 = vld [vmem:[%s624 + $0x160] sm:$0xff]
        %v2019 = vld [vmem:[%s624 + $0x168] sm:$0xff]
        %v2020 = vld [vmem:[%s624 + $0x170] sm:$0xff]
        %v2021 = vld [vmem:[%s624 + $0x178] sm:$0xff]
        %v2022 = vld [vmem:[%s624 + $0x180] sm:$0xff]
        %v2023 = vld [vmem:[%s624 + $0x188] sm:$0xff]
        %v2024 = vld [vmem:[%s624 + $0x190] sm:$0xff]
        %v2025 = vld [vmem:[%s624 + $0x198] sm:$0xff]
        %v2026 = vld [vmem:[%s624 + $0x1a0] sm:$0xff]
        %v2027 = vld [vmem:[%s624 + $0x1a8] sm:$0xff]
        %v2028 = vld [vmem:[%s624 + $0x1b0] sm:$0xff]
        %v2029 = vld [vmem:[%s624 + $0x1b8] sm:$0xff]
        %v2030 = vld [vmem:[%s624 + $0x1c0] sm:$0xff]
        %v2031 = vld [vmem:[%s624 + $0x1c8] sm:$0xff]
        %v2032 = vld [vmem:[%s624 + $0x1d0] sm:$0xff]
        %v2033 = vld [vmem:[%s624 + $0x1d8] sm:$0xff]
        %v2034 = vld [vmem:[%s624 + $0x1e0] sm:$0xff]
        %v2035 = vld [vmem:[%s624 + $0x1e8] sm:$0xff]
        %v2036 = vld [vmem:[%s624 + $0x1f0] sm:$0xff]
        %v2037 = vld [vmem:[%s624 + $0x1f8] sm:$0xff]
        %v2038 = vld [vmem:[%s746] sm:$0x3]
        %v2040 = vlaneseq
        %v2041 = vshrl.u32 %v2040, 7
        %v2042 = vsub.s32 0, %v2041
        %v2043 = vrot.slane %v2038, %v2042
        %v2044 = vlaneseq
        %v2045 = vshrl.u32 %v2044, 7
        %v2046 = vsub.s32 1, %v2045
        %v2047 = vrot.slane %v2038, %v2046
        %v2114 = vunpack.c.l.b16 %v1974
        %v2115 = vunpack.c.h.b16 %v1974
        %v2116 = vunpack.c.l.b16 %v1975
        %v2117 = vunpack.c.h.b16 %v1975
        %v2118 = vunpack.c.l.b16 %v1976
        %v2119 = vunpack.c.h.b16 %v1976
        %v2120 = vunpack.c.l.b16 %v1977
        %v2121 = vunpack.c.h.b16 %v1977
        %v2122 = vunpack.c.l.b16 %v1978
        %v2123 = vunpack.c.h.b16 %v1978
        %v2124 = vunpack.c.l.b16 %v1979
        %v2125 = vunpack.c.h.b16 %v1979
        %v2126 = vunpack.c.l.b16 %v1980
        %v2127 = vunpack.c.h.b16 %v1980
        %v2128 = vunpack.c.l.b16 %v1981
        %v2129 = vunpack.c.h.b16 %v1981
        %v2130 = vunpack.c.l.b16 %v1982
        %v2131 = vunpack.c.h.b16 %v1982
        %v2132 = vunpack.c.l.b16 %v1983
        %v2133 = vunpack.c.h.b16 %v1983
        %v2134 = vunpack.c.l.b16 %v1984
        %v2135 = vunpack.c.h.b16 %v1984
        %v2136 = vunpack.c.l.b16 %v1985
        %v2137 = vunpack.c.h.b16 %v1985
        %v2138 = vunpack.c.l.b16 %v1986
        %v2139 = vunpack.c.h.b16 %v1986
        %v2140 = vunpack.c.l.b16 %v1987
        %v2141 = vunpack.c.h.b16 %v1987
        %v2142 = vunpack.c.l.b16 %v1988
        %v2143 = vunpack.c.h.b16 %v1988
        %v2144 = vunpack.c.l.b16 %v1989
        %v2145 = vunpack.c.h.b16 %v1989
        %v2146 = vunpack.c.l.b16 %v1990
        %v2147 = vunpack.c.h.b16 %v1990
        %v2148 = vunpack.c.l.b16 %v1991
        %v2149 = vunpack.c.h.b16 %v1991
        %v2150 = vunpack.c.l.b16 %v1992
        %v2151 = vunpack.c.h.b16 %v1992
        %v2152 = vunpack.c.l.b16 %v1993
        %v2153 = vunpack.c.h.b16 %v1993
        %v2154 = vunpack.c.l.b16 %v1994
        %v2155 = vunpack.c.h.b16 %v1994
        %v2156 = vunpack.c.l.b16 %v1995
        %v2157 = vunpack.c.h.b16 %v1995
        %v2158 = vunpack.c.l.b16 %v1996
        %v2159 = vunpack.c.h.b16 %v1996
        %v2160 = vunpack.c.l.b16 %v1997
        %v2161 = vunpack.c.h.b16 %v1997
        %v2162 = vunpack.c.l.b16 %v1998
        %v2163 = vunpack.c.h.b16 %v1998
        %v2164 = vunpack.c.l.b16 %v1999
        %v2165 = vunpack.c.h.b16 %v1999
        %v2166 = vunpack.c.l.b16 %v2000
        %v2167 = vunpack.c.h.b16 %v2000
        %v2168 = vunpack.c.l.b16 %v2001
        %v2169 = vunpack.c.h.b16 %v2001
        %v2170 = vunpack.c.l.b16 %v2002
        %v2171 = vunpack.c.h.b16 %v2002
        %v2172 = vunpack.c.l.b16 %v2003
        %v2173 = vunpack.c.h.b16 %v2003
        %v2174 = vunpack.c.l.b16 %v2004
        %v2175 = vunpack.c.h.b16 %v2004
        %v2176 = vunpack.c.l.b16 %v2005
        %v2177 = vunpack.c.h.b16 %v2005
        %v2178 = vunpack.c.l.b16 %v2006
        %v2179 = vunpack.c.h.b16 %v2006
        %v2180 = vunpack.c.l.b16 %v2007
        %v2181 = vunpack.c.h.b16 %v2007
        %v2182 = vunpack.c.l.b16 %v2008
        %v2183 = vunpack.c.h.b16 %v2008
        %v2184 = vunpack.c.l.b16 %v2009
        %v2185 = vunpack.c.h.b16 %v2009
        %v2186 = vunpack.c.l.b16 %v2010
        %v2187 = vunpack.c.h.b16 %v2010
        %v2188 = vunpack.c.l.b16 %v2011
        %v2189 = vunpack.c.h.b16 %v2011
        %v2190 = vunpack.c.l.b16 %v2012
        %v2191 = vunpack.c.h.b16 %v2012
        %v2192 = vunpack.c.l.b16 %v2013
        %v2193 = vunpack.c.h.b16 %v2013
        %v2194 = vunpack.c.l.b16 %v2014
        %v2195 = vunpack.c.h.b16 %v2014
        %v2196 = vunpack.c.l.b16 %v2015
        %v2197 = vunpack.c.h.b16 %v2015
        %v2198 = vunpack.c.l.b16 %v2016
        %v2199 = vunpack.c.h.b16 %v2016
        %v2200 = vunpack.c.l.b16 %v2017
        %v2201 = vunpack.c.h.b16 %v2017
        %v2202 = vunpack.c.l.b16 %v2018
        %v2203 = vunpack.c.h.b16 %v2018
        %v2204 = vunpack.c.l.b16 %v2019
        %v2205 = vunpack.c.h.b16 %v2019
        %v2206 = vunpack.c.l.b16 %v2020
        %v2207 = vunpack.c.h.b16 %v2020
        %v2208 = vunpack.c.l.b16 %v2021
        %v2209 = vunpack.c.h.b16 %v2021
        %v2210 = vunpack.c.l.b16 %v2022
        %v2211 = vunpack.c.h.b16 %v2022
        %v2212 = vunpack.c.l.b16 %v2023
        %v2213 = vunpack.c.h.b16 %v2023
        %v2214 = vunpack.c.l.b16 %v2024
        %v2215 = vunpack.c.h.b16 %v2024
        %v2216 = vunpack.c.l.b16 %v2025
        %v2217 = vunpack.c.h.b16 %v2025
        %v2218 = vunpack.c.l.b16 %v2026
        %v2219 = vunpack.c.h.b16 %v2026
        %v2220 = vunpack.c.l.b16 %v2027
        %v2221 = vunpack.c.h.b16 %v2027
        %v2222 = vunpack.c.l.b16 %v2028
        %v2223 = vunpack.c.h.b16 %v2028
        %v2224 = vunpack.c.l.b16 %v2029
        %v2225 = vunpack.c.h.b16 %v2029
        %v2226 = vunpack.c.l.b16 %v2030
        %v2227 = vunpack.c.h.b16 %v2030
        %v2228 = vunpack.c.l.b16 %v2031
        %v2229 = vunpack.c.h.b16 %v2031
        %v2230 = vunpack.c.l.b16 %v2032
        %v2231 = vunpack.c.h.b16 %v2032
        %v2232 = vunpack.c.l.b16 %v2033
        %v2233 = vunpack.c.h.b16 %v2033
        %v2234 = vunpack.c.l.b16 %v2034
        %v2235 = vunpack.c.h.b16 %v2034
        %v2236 = vunpack.c.l.b16 %v2035
        %v2237 = vunpack.c.h.b16 %v2035
        %v2238 = vunpack.c.l.b16 %v2036
        %v2239 = vunpack.c.h.b16 %v2036
        %v2240 = vunpack.c.l.b16 %v2037
        %v2241 = vunpack.c.h.b16 %v2037
        %v2242 = vpack.c.b16 %v2116, %v2114
        %v2243 = vpack.c.b16 %v2117, %v2115
        %v2244 = vpack.c.b16 %v2120, %v2118
        %v2245 = vpack.c.b16 %v2121, %v2119
        %v2246 = vpack.c.b16 %v2124, %v2122
        %v2247 = vpack.c.b16 %v2125, %v2123
        %v2248 = vpack.c.b16 %v2128, %v2126
        %v2249 = vpack.c.b16 %v2129, %v2127
        %v2250 = vpack.c.b16 %v2132, %v2130
        %v2251 = vpack.c.b16 %v2133, %v2131
        %v2252 = vpack.c.b16 %v2136, %v2134
        %v2253 = vpack.c.b16 %v2137, %v2135
        %v2254 = vpack.c.b16 %v2140, %v2138
        %v2255 = vpack.c.b16 %v2141, %v2139
        %v2256 = vpack.c.b16 %v2144, %v2142
        %v2257 = vpack.c.b16 %v2145, %v2143
        %v2258 = vpack.c.b16 %v2148, %v2146
        %v2259 = vpack.c.b16 %v2149, %v2147
        %v2260 = vpack.c.b16 %v2152, %v2150
        %v2261 = vpack.c.b16 %v2153, %v2151
        %v2262 = vpack.c.b16 %v2156, %v2154
        %v2263 = vpack.c.b16 %v2157, %v2155
        %v2264 = vpack.c.b16 %v2160, %v2158
        %v2265 = vpack.c.b16 %v2161, %v2159
        %v2266 = vpack.c.b16 %v2164, %v2162
        %v2267 = vpack.c.b16 %v2165, %v2163
        %v2268 = vpack.c.b16 %v2168, %v2166
        %v2269 = vpack.c.b16 %v2169, %v2167
        %v2270 = vpack.c.b16 %v2172, %v2170
        %v2271 = vpack.c.b16 %v2173, %v2171
        %v2272 = vpack.c.b16 %v2176, %v2174
        %v2273 = vpack.c.b16 %v2177, %v2175
        %v2274 = vpack.c.b16 %v2180, %v2178
        %v2275 = vpack.c.b16 %v2181, %v2179
        %v2276 = vpack.c.b16 %v2184, %v2182
        %v2277 = vpack.c.b16 %v2185, %v2183
        %v2278 = vpack.c.b16 %v2188, %v2186
        %v2279 = vpack.c.b16 %v2189, %v2187
        %v2280 = vpack.c.b16 %v2192, %v2190
        %v2281 = vpack.c.b16 %v2193, %v2191
        %v2282 = vpack.c.b16 %v2196, %v2194
        %v2283 = vpack.c.b16 %v2197, %v2195
        %v2284 = vpack.c.b16 %v2200, %v2198
        %v2285 = vpack.c.b16 %v2201, %v2199
        %v2286 = vpack.c.b16 %v2204, %v2202
        %v2287 = vpack.c.b16 %v2205, %v2203
        %v2288 = vpack.c.b16 %v2208, %v2206
        %v2289 = vpack.c.b16 %v2209, %v2207
        %v2290 = vpack.c.b16 %v2212, %v2210
        %v2291 = vpack.c.b16 %v2213, %v2211
        %v2292 = vpack.c.b16 %v2216, %v2214
        %v2293 = vpack.c.b16 %v2217, %v2215
        %v2294 = vpack.c.b16 %v2220, %v2218
        %v2295 = vpack.c.b16 %v2221, %v2219
        %v2296 = vpack.c.b16 %v2224, %v2222
        %v2297 = vpack.c.b16 %v2225, %v2223
        %v2298 = vpack.c.b16 %v2228, %v2226
        %v2299 = vpack.c.b16 %v2229, %v2227
        %v2300 = vpack.c.b16 %v2232, %v2230
        %v2301 = vpack.c.b16 %v2233, %v2231
        %v2302 = vpack.c.b16 %v2236, %v2234
        %v2303 = vpack.c.b16 %v2237, %v2235
        %v2304 = vpack.c.b16 %v2240, %v2238
        %v2305 = vpack.c.b16 %v2241, %v2239
        %2370 = vmatprep.subr.bf16.mxu0 %v2257
        %2371 = vmatpush1.bf16.msra.mxu0 %v2256
        %2372 = vmatprep.subr.bf16.mxu0 %v2255
        %2373 = vmatpush1.bf16.msra.mxu0 %v2254
        %2374 = vmatprep.subr.bf16.mxu0 %v2253
        %2375 = vmatpush1.bf16.msra.mxu0 %v2252
        %2376 = vmatprep.subr.bf16.mxu0 %v2251
        %2377 = vmatpush1.bf16.msra.mxu0 %v2250
        %2378 = vmatprep.subr.bf16.mxu0 %v2249
        %2379 = vmatpush1.bf16.msra.mxu0 %v2248
        %2380 = vmatprep.subr.bf16.mxu0 %v2247
        %2381 = vmatpush1.bf16.msra.mxu0 %v2246
        %2382 = vmatprep.subr.bf16.mxu0 %v2245
        %2383 = vmatpush1.bf16.msra.mxu0 %v2244
        %2384 = vmatprep.subr.bf16.mxu0 %v2243
        %2385 = vmatpush1.bf16.msra.mxu0 %v2242
        %2386 = vmatprep.subr.bf16.mxu0 %v2273
        %2387 = vmatpush2.bf16.msra.mxu0 %v2272
        %2388 = vmatprep.subr.bf16.mxu0 %v2271
        %2389 = vmatpush2.bf16.msra.mxu0 %v2270
        %2390 = vmatprep.subr.bf16.mxu0 %v2269
        %2391 = vmatpush2.bf16.msra.mxu0 %v2268
        %2392 = vmatprep.subr.bf16.mxu0 %v2267
        %2393 = vmatpush2.bf16.msra.mxu0 %v2266
        %2394 = vmatprep.subr.bf16.mxu0 %v2265
        %2395 = vmatpush2.bf16.msra.mxu0 %v2264
        %2396 = vmatprep.subr.bf16.mxu0 %v2263
        %2397 = vmatpush2.bf16.msra.mxu0 %v2262
        %2398 = vmatprep.subr.bf16.mxu0 %v2261
        %2399 = vmatpush2.bf16.msra.mxu0 %v2260
        %2400 = vmatprep.subr.bf16.mxu0 %v2259
        %2401 = vmatpush2.bf16.msra.mxu0 %v2258
        %2402 = vmatprep.mubr.bf16.mxu0 %v1971
        %2403 = vmatmul.mubr.bf16.gmra.mxu0 %v1970
        %v2404 = vpop.f32.mrf.mxu0
        %v2405 = vadd.f32 %v2043, %v2404
        %v2406 = vpop.f32.mrf.mxu0
        %v2407 = vadd.f32 %v2047, %v2406
        %v2408 = vpop.f32.mrf.mxu0
        %v2409 = vadd.f32 %v2043, %v2408
        %v2410 = vpop.f32.mrf.mxu0
        %v2411 = vadd.f32 %v2047, %v2410
        %2412 = vdwg.mxu0
        %2413 = vmatprep.subr.bf16.mxu0 %v2289
        %2414 = vmatpush1.bf16.msra.mxu0 %v2288
        %2415 = vmatprep.subr.bf16.mxu0 %v2287
        %2416 = vmatpush1.bf16.msra.mxu0 %v2286
        %2417 = vmatprep.subr.bf16.mxu0 %v2285
        %2418 = vmatpush1.bf16.msra.mxu0 %v2284
        %2419 = vmatprep.subr.bf16.mxu0 %v2283
        %2420 = vmatpush1.bf16.msra.mxu0 %v2282
        %2421 = vmatprep.subr.bf16.mxu0 %v2281
        %2422 = vmatpush1.bf16.msra.mxu0 %v2280
        %2423 = vmatprep.subr.bf16.mxu0 %v2279
        %2424 = vmatpush1.bf16.msra.mxu0 %v2278
        %2425 = vmatprep.subr.bf16.mxu0 %v2277
        %2426 = vmatpush1.bf16.msra.mxu0 %v2276
        %2427 = vmatprep.subr.bf16.mxu0 %v2275
        %2428 = vmatpush1.bf16.msra.mxu0 %v2274
        %2429 = vmatprep.subr.bf16.mxu0 %v2305
        %2430 = vmatpush2.bf16.msra.mxu0 %v2304
        %2431 = vmatprep.subr.bf16.mxu0 %v2303
        %2432 = vmatpush2.bf16.msra.mxu0 %v2302
        %2433 = vmatprep.subr.bf16.mxu0 %v2301
        %2434 = vmatpush2.bf16.msra.mxu0 %v2300
        %2435 = vmatprep.subr.bf16.mxu0 %v2299
        %2436 = vmatpush2.bf16.msra.mxu0 %v2298
        %2437 = vmatprep.subr.bf16.mxu0 %v2297
        %2438 = vmatpush2.bf16.msra.mxu0 %v2296
        %2439 = vmatprep.subr.bf16.mxu0 %v2295
        %2440 = vmatpush2.bf16.msra.mxu0 %v2294
        %2441 = vmatprep.subr.bf16.mxu0 %v2293
        %2442 = vmatpush2.bf16.msra.mxu0 %v2292
        %2443 = vmatprep.subr.bf16.mxu0 %v2291
        %2444 = vmatpush2.bf16.msra.mxu0 %v2290
        %2445 = vmatprep.mubr.bf16.mxu0 %v1973
        %2446 = vmatmul.mubr.bf16.gmra.mxu0 %v1972
        %v2447 = vpop.f32.mrf.mxu0
        %v2448 = vadd.f32 %v2405, %v2447
        %v2449 = vpop.f32.mrf.mxu0
        %v2450 = vadd.f32 %v2407, %v2449
        %v2451 = vpop.f32.mrf.mxu0
        %v2452 = vadd.f32 %v2409, %v2451
        %v2453 = vpop.f32.mrf.mxu0
        %v2454 = vadd.f32 %v2411, %v2453
        %2455 = vdwg.mxu0
        %v2456 = vmax.f32 %v2448, 0.0
        %v2457 = vmax.f32 %v2450, 0.0
        %v2458 = vmax.f32 %v2452, 0.0
        %v2459 = vmax.f32 %v2454, 0.0
        %v2460 = vpack.c.bf16 %v2458, %v2456
        %v2461 = vpack.c.bf16 %v2459, %v2457
        %v2462 = vld [vmem:[%s633] sm:$0xf]
        %v2463 = vld [vmem:[%s633 + $0x4] sm:$0xf]
        %v2464 = vld [vmem:[%s633 + $0x8] sm:$0xf]
        %v2465 = vld [vmem:[%s633 + $0xc] sm:$0xf]
        %v2466 = vld [vmem:[%s633 + $0x10] sm:$0xf]
        %v2467 = vld [vmem:[%s633 + $0x14] sm:$0xf]
        %v2468 = vld [vmem:[%s633 + $0x18] sm:$0xf]
        %v2469 = vld [vmem:[%s633 + $0x1c] sm:$0xf]
        %v2470 = vld [vmem:[%s633 + $0x20] sm:$0xf]
        %v2471 = vld [vmem:[%s633 + $0x24] sm:$0xf]
        %v2472 = vld [vmem:[%s633 + $0x28] sm:$0xf]
        %v2473 = vld [vmem:[%s633 + $0x2c] sm:$0xf]
        %v2474 = vld [vmem:[%s633 + $0x30] sm:$0xf]
        %v2475 = vld [vmem:[%s633 + $0x34] sm:$0xf]
        %v2476 = vld [vmem:[%s633 + $0x38] sm:$0xf]
        %v2477 = vld [vmem:[%s633 + $0x3c] sm:$0xf]
        %v2478 = vld [vmem:[%s633 + $0x40] sm:$0xf]
        %v2479 = vld [vmem:[%s633 + $0x44] sm:$0xf]
        %v2480 = vld [vmem:[%s633 + $0x48] sm:$0xf]
        %v2481 = vld [vmem:[%s633 + $0x4c] sm:$0xf]
        %v2482 = vld [vmem:[%s633 + $0x50] sm:$0xf]
        %v2483 = vld [vmem:[%s633 + $0x54] sm:$0xf]
        %v2484 = vld [vmem:[%s633 + $0x58] sm:$0xf]
        %v2485 = vld [vmem:[%s633 + $0x5c] sm:$0xf]
        %v2486 = vld [vmem:[%s633 + $0x60] sm:$0xf]
        %v2487 = vld [vmem:[%s633 + $0x64] sm:$0xf]
        %v2488 = vld [vmem:[%s633 + $0x68] sm:$0xf]
        %v2489 = vld [vmem:[%s633 + $0x6c] sm:$0xf]
        %v2490 = vld [vmem:[%s633 + $0x70] sm:$0xf]
        %v2491 = vld [vmem:[%s633 + $0x74] sm:$0xf]
        %v2492 = vld [vmem:[%s633 + $0x78] sm:$0xf]
        %v2493 = vld [vmem:[%s633 + $0x7c] sm:$0xf]
        %v2494 = vld [vmem:[%s749] sm:$0x1]
        %v2496 = vlaneseq
        %v2497 = vshrl.u32 %v2496, 7
        %v2498 = vsub.s32 0, %v2497
        %v2499 = vrot.slane %v2494, %v2498
        %v2533 = vunpack.c.l.b16 %v2462
        %v2534 = vunpack.c.l.b16 %v2463
        %v2535 = vunpack.c.l.b16 %v2464
        %v2536 = vunpack.c.l.b16 %v2465
        %v2537 = vunpack.c.l.b16 %v2466
        %v2538 = vunpack.c.l.b16 %v2467
        %v2539 = vunpack.c.l.b16 %v2468
        %v2540 = vunpack.c.l.b16 %v2469
        %v2541 = vunpack.c.l.b16 %v2470
        %v2542 = vunpack.c.l.b16 %v2471
        %v2543 = vunpack.c.l.b16 %v2472
        %v2544 = vunpack.c.l.b16 %v2473
        %v2545 = vunpack.c.l.b16 %v2474
        %v2546 = vunpack.c.l.b16 %v2475
        %v2547 = vunpack.c.l.b16 %v2476
        %v2548 = vunpack.c.l.b16 %v2477
        %v2549 = vunpack.c.l.b16 %v2478
        %v2550 = vunpack.c.l.b16 %v2479
        %v2551 = vunpack.c.l.b16 %v2480
        %v2552 = vunpack.c.l.b16 %v2481
        %v2553 = vunpack.c.l.b16 %v2482
        %v2554 = vunpack.c.l.b16 %v2483
        %v2555 = vunpack.c.l.b16 %v2484
        %v2556 = vunpack.c.l.b16 %v2485
        %v2557 = vunpack.c.l.b16 %v2486
        %v2558 = vunpack.c.l.b16 %v2487
        %v2559 = vunpack.c.l.b16 %v2488
        %v2560 = vunpack.c.l.b16 %v2489
        %v2561 = vunpack.c.l.b16 %v2490
        %v2562 = vunpack.c.l.b16 %v2491
        %v2563 = vunpack.c.l.b16 %v2492
        %v2564 = vunpack.c.l.b16 %v2493
        %v2565 = vpack.c.b16 %v2534, %v2533
        %v2566 = vpack.c.b16 %v2536, %v2535
        %v2567 = vpack.c.b16 %v2538, %v2537
        %v2568 = vpack.c.b16 %v2540, %v2539
        %v2569 = vpack.c.b16 %v2542, %v2541
        %v2570 = vpack.c.b16 %v2544, %v2543
        %v2571 = vpack.c.b16 %v2546, %v2545
        %v2572 = vpack.c.b16 %v2548, %v2547
        %v2573 = vpack.c.b16 %v2550, %v2549
        %v2574 = vpack.c.b16 %v2552, %v2551
        %v2575 = vpack.c.b16 %v2554, %v2553
        %v2576 = vpack.c.b16 %v2556, %v2555
        %v2577 = vpack.c.b16 %v2558, %v2557
        %v2578 = vpack.c.b16 %v2560, %v2559
        %v2579 = vpack.c.b16 %v2562, %v2561
        %v2580 = vpack.c.b16 %v2564, %v2563
        %2597 = vmatprep.subr.bf16.mxu0 0
        %2598 = vmatpush1.bf16.msra.mxu0 %v2572
        %2599 = vmatprep.subr.bf16.mxu0 0
        %2600 = vmatpush1.bf16.msra.mxu0 %v2571
        %2601 = vmatprep.subr.bf16.mxu0 0
        %2602 = vmatpush1.bf16.msra.mxu0 %v2570
        %2603 = vmatprep.subr.bf16.mxu0 0
        %2604 = vmatpush1.bf16.msra.mxu0 %v2569
        %2605 = vmatprep.subr.bf16.mxu0 0
        %2606 = vmatpush1.bf16.msra.mxu0 %v2568
        %2607 = vmatprep.subr.bf16.mxu0 0
        %2608 = vmatpush1.bf16.msra.mxu0 %v2567
        %2609 = vmatprep.subr.bf16.mxu0 0
        %2610 = vmatpush1.bf16.msra.mxu0 %v2566
        %2611 = vmatprep.subr.bf16.mxu0 0
        %2612 = vmatpush1.bf16.msra.mxu0 %v2565
        %2613 = vmatprep.subr.bf16.mxu0 0
        %2614 = vmatpush2.bf16.msra.mxu0 %v2580
        %2615 = vmatprep.subr.bf16.mxu0 0
        %2616 = vmatpush2.bf16.msra.mxu0 %v2579
        %2617 = vmatprep.subr.bf16.mxu0 0
        %2618 = vmatpush2.bf16.msra.mxu0 %v2578
        %2619 = vmatprep.subr.bf16.mxu0 0
        %2620 = vmatpush2.bf16.msra.mxu0 %v2577
        %2621 = vmatprep.subr.bf16.mxu0 0
        %2622 = vmatpush2.bf16.msra.mxu0 %v2576
        %2623 = vmatprep.subr.bf16.mxu0 0
        %2624 = vmatpush2.bf16.msra.mxu0 %v2575
        %2625 = vmatprep.subr.bf16.mxu0 0
        %2626 = vmatpush2.bf16.msra.mxu0 %v2574
        %2627 = vmatprep.subr.bf16.mxu0 0
        %2628 = vmatpush2.bf16.msra.mxu0 %v2573
        %2629 = vmatprep.mubr.bf16.mxu0 %v2461
        %2630 = vmatmul.mubr.bf16.gmra.mxu0 %v2460
        %v2631 = vpop.f32.mrf.mxu0
        %v2632 = vadd.f32 %v2499, %v2631
        %v2633 = vpop.f32.mrf.mxu0
        %v2634 = vpop.f32.mrf.mxu0
        %v2635 = vadd.f32 %v2499, %v2634
        %v2636 = vpop.f32.mrf.mxu0
        %2637 = vdwg.mxu0
        %p2638 = scmp.eq.s32.totalorder %s34, 0
        // Predicated region
        $region97: #{actor_critic_forward.1} parent=75 // pred_check
          %p2639 = pneg %p2638
        $region98: #{actor_critic_forward.1} parent=75 // pred_check_branch
          %2641 = sbr.rel (%p2639) target = $region100
        $region99: #{actor_critic_forward.1} parent=75 // pred_region
          %v2642 = vlaneseq
          %v2643 = vand.u32 %v2642, 127
          %vm2644 = vcmp.lt.s32.totalorder %v2643, 6
          %v2645 = vsel %vm2644, %v2632, -1e+30
          %v2646 = vsel %vm2644, %v2635, -1e+30
          %2647 = vmax.xlane.f32.xlu0 %v2645
          %v2648 = vpop.xlane.xlu0 %2647
          %2649 = vmax.xlane.f32.xlu0 %v2646
          %v2650 = vpop.xlane.xlu0 %2649
          %v2651 = vsub.f32 %v2645, %v2648
          %v2652 = vsub.f32 %v2646, %v2650
          %v2653 = vmul.f32 %v2651, 1.442695
          %v2654 = vpow.pop %v2653
          %v2655 = vmul.f32 %v2652, 1.442695
          %v2656 = vpow.pop %v2655
          %v2657 = vsel %vm2644, %v2654, 0.0
          %v2658 = vsel %vm2644, %v2656, 0.0
          %2659 = vadd.xlane.f32.xlu0 %v2657
          %v2660 = vpop.xlane.xlu0 %2659
          %2661 = vadd.xlane.f32.xlu0 %v2658
          %v2662 = vpop.xlane.xlu0 %2661
          %v2663 = vrcp.pop %v2660
          %v2664 = vmul.f32 %v2657, %v2663
          %v2665 = vrcp.pop %v2662
          %v2666 = vmul.f32 %v2658, %v2665
          %v2667 = vpack.c.bf16 %v2666, %v2664
          %v2669 = vunpack.c.l.b16 %v2667
          %v2670 = vunpack.c.h.b16 %v2667
          %v2671 = vpack.c.b16 %v2669, %v2669
          %v2672 = vpack.c.b16 %v2670, %v2670
          %2675 = vst [vmem:[%s754] sm:$0xf] %v2671
          %2676 = vst [vmem:[%s754 + $0x4] sm:$0xf] %v2672
        $region100: #{actor_critic_forward.1} parent=75 // pred_fallthru
          _
        %p2677 = scmp.eq.s32.totalorder %s34, 1
        // Predicated region
        $region101: #{actor_critic_forward.1} parent=75 // pred_check
          %p2678 = pneg %p2677
        $region102: #{actor_critic_forward.1} parent=75 // pred_check_branch
          %2680 = sbr.rel (%p2678) target = $region104
        $region103: #{actor_critic_forward.1} parent=75 // pred_region
          %v2681 = vpack.c.bf16 %v2635, %v2632
          %v2683 = vunpack.c.l.b16 %v2681
          %v2684 = vunpack.c.h.b16 %v2681
          %v2685 = vpack.c.b16 %v2683, %v2683
          %v2686 = vpack.c.b16 %v2684, %v2684
          %2689 = vst [vmem:[%s754] sm:$0xf] %v2685
          %2690 = vst [vmem:[%s754 + $0x4] sm:$0xf] %v2686
        $region104: #{actor_critic_forward.1} parent=75 // pred_fallthru
          _
        %p2691 = scmp.lt.s32.totalorder %s34, 1
        %s2692 = scalar_select %p2691, %s34, 1
        %s2693 = smul.addr %s2692, 2
        %s2694 = smul.addr %s2693, 4
        %s2695 = scalar_lea.vmem %s14, %s2694
        // Predicated region
        $region105: #{actor_critic_forward.1} parent=75 // pred_check
          %p2696 = pneg %p406
        $region106: #{actor_critic_forward.1} parent=75 // pred_check_branch
          %2698 = sbr.rel (%p2696) target = $region108
        $region107: #{actor_critic_forward.1} parent=75 // pred_region
          _
        $region108: #{actor_critic_forward.1} parent=75 // pred_fallthru
          _
      $region76: #{actor_critic_forward.1} parent=5 // pred_fallthru
        _
      %p2699 = scmp.le.s32.totalorder 2, %s29
      // Predicated region
      $region109: #{actor_critic_forward.1} parent=5 // pred_check
        %p2700 = pneg %p2699
      $region110: #{actor_critic_forward.1} parent=5 // pred_check_branch
        %2702 = sbr.rel (%p2700) target = $region112
      $region111: #{actor_critic_forward.1} parent=5 // pred_region
        %s2703 = ssub.s32 %s29, 2
        // Predicated region
        $region113: #{actor_critic_forward.1} parent=111 // pred_check
          %p2704 = pneg %p412
        $region114: #{actor_critic_forward.1} parent=111 // pred_check_branch
          %2706 = sbr.rel (%p2704) target = $region116
        $region115: #{actor_critic_forward.1} parent=111 // pred_region
          %p2707 = scmp.lt.s32.totalorder %s35, 1
          %s2708 = scalar_select %p2707, %s35, 1
          %s2709 = smul.addr %s2708, 2
          %s2710 = smul.addr %s2709, 4
          %s2711 = scalar_lea.vmem %s14, %s2710
        $region116: #{actor_critic_forward.1} parent=111 // pred_fallthru
          _
      $region112: #{actor_critic_forward.1} parent=5 // pred_fallthru
        _
    $region6: #{actor_critic_forward.1} parent=1 // loop_footer
      %s33 = sadd.s32 1, %s29
    $region7: #{actor_critic_forward.1} parent=1 // loop_footer_branch
      %28 = sbr.rel target = $region3
    $region8: #{actor_critic_forward.1} parent=1 // loop_exit
      _
    %2712 = vsyncpa [#allocation3], 1
    %s2713 = scalar_lea.sflag [#allocation3], 1
    %2714 = vsyncpa %s2713, 1
    %2715 = vsyncpa [#allocation5], 1
    %s2716 = scalar_lea.sflag [#allocation5], 1
    %2717 = vsyncpa %s2716, 1
    %2718 = vsyncpa [#allocation8], 1
    %s2719 = scalar_lea.sflag [#allocation8], 1
    %2720 = vsyncpa %s2719, 1

</llo_original>
